<compile_context>
chip_gen: v6e
topology: v6e:2x2x1
jax: 0.10.0
libtpu: 0.0.40
codegen_flags: <defaults>
</compile_context>

<pallas_src>
from functools import partial

import jax
import jax.numpy as jnp
import numpy as np
from jax.experimental import pallas as pl
from jax.experimental.pallas import tpu as pltpu

HIDDEN_LAYERS = 5
FILTER_COEFF = 5
OUT_DIM = 4

# Above this N the G^3/G^4 precompute (extra ~4N^3 MXU FLOPs) stops paying for
# the halved per-stage chain depth.  TODO(synk): gate per generation (v5e's
# 197 TF/s MXU breaks even at a smaller N than v6e/v7x).
_SMALL_N_POWER_PRECOMPUTE = 512


def regnn_kernel(alpha_h_ref, alpha_o_ref, g_ref, xt_ref, out_ref,
                 *, precompute_high_powers):
    # alpha_h_ref: SMEM (HIDDEN_LAYERS, FILTER_COEFF) f32
    # alpha_o_ref: SMEM (OUT_DIM, FILTER_COEFF)       f32
    # g_ref:       VMEM (N, N) f32   -- G = H^T (unscaled, scaled in place here)
    # xt_ref:      VMEM (F, N) f32   -- x^T (unscaled)
    # out_ref:     VMEM (OUT_DIM, N) f32  -- lane-dense output, transposed by wrapper

    # Scale H in place: (H^T + 1)/2 == ((H + 1)/2)^T, so no second N^2 copy.
    g_ref[...] = (g_ref[...] + 1.0) * 0.5
    G = g_ref[...]

    # One wide matmul up front; every later tap chain is depth <= 2.
    G2 = jnp.dot(G, G, preferred_element_type=jnp.float32)

    if precompute_high_powers:
        # Small-N / latency-bound: G^3, G^4 are independent given G^2, so all
        # four taps per stage become independent single matvecs (depth 1).
        G3 = jnp.dot(G2, G, preferred_element_type=jnp.float32)
        G4 = jnp.dot(G2, G2, preferred_element_type=jnp.float32)

        def taps(row):
            t1 = jnp.dot(row, G, preferred_element_type=jnp.float32)
            t2 = jnp.dot(row, G2, preferred_element_type=jnp.float32)
            t3 = jnp.dot(row, G3, preferred_element_type=jnp.float32)
            t4 = jnp.dot(row, G4, preferred_element_type=jnp.float32)
            return t1, t2, t3, t4
    else:
        # Large-N: avoid the extra ~4N^3 FLOPs; taps are depth-2 off G^2.
        def taps(row):
            t1 = jnp.dot(row, G, preferred_element_type=jnp.float32)
            t2 = jnp.dot(row, G2, preferred_element_type=jnp.float32)
            t3 = jnp.dot(t1, G2, preferred_element_type=jnp.float32)
            t4 = jnp.dot(t2, G2, preferred_element_type=jnp.float32)
            return t1, t2, t3, t4

    # Collapse the feature dimension once (exact: rowsum(H^j x) = H^j rowsum(x)).
    x = (xt_ref[...] + 1.0) * 0.5            # (F, N)
    row = jnp.sum(x, axis=0, keepdims=True)   # (1, N), lane-dense iterate

    # Hidden graph-filter layers: row <- relu(sum_j alpha[i,j] * row @ G^j),
    # then mean-normalize (matches torch cat(dim=1)+sum(dim=1)+relu+/mean).
    for i in range(HIDDEN_LAYERS):
        t1, t2, t3, t4 = taps(row)
        y = (alpha_h_ref[i, 0] * row
             + alpha_h_ref[i, 1] * t1
             + alpha_h_ref[i, 2] * t2
             + alpha_h_ref[i, 3] * t3
             + alpha_h_ref[i, 4] * t4)
        row = jnp.maximum(y, 0.0)
        mean = jnp.mean(row, axis=1, keepdims=True)          # (1, 1)
        # approx=False keeps the reference's 0/0 -> NaN semantics.
        row = row * pl.reciprocal(mean, approx=False)

    # Output stage: taps computed once; the OUT_DIM heads are plain VPU axpys
    # with SMEM scalars (no tiny K=5 MXU dot on the chain).
    t1, t2, t3, t4 = taps(row)
    heads = []
    for i in range(OUT_DIM):
        heads.append(alpha_o_ref[i, 0] * row
                     + alpha_o_ref[i, 1] * t1
                     + alpha_o_ref[i, 2] * t2
                     + alpha_o_ref[i, 3] * t3
                     + alpha_o_ref[i, 4] * t4)
    out_t = jnp.concatenate(heads, axis=0)                   # (OUT_DIM, N)

    # Softmax over heads (axis 0 of the transposed layout).
    m = jnp.max(out_t, axis=0, keepdims=True)
    e = jnp.exp(out_t - m)
    denom = jnp.sum(e, axis=0, keepdims=True)
    # denom >= 1 (max element contributes exp(0)=1), so the approx EUP path is safe.
    out_ref[...] = e * pl.reciprocal(denom, approx=True)


def _vmem_limit_bytes():
    # Per-generation scoped-VMEM ceiling: ~85% of physical VMEM
    # (v5e/v6e: 128 MiB -> ~108 MiB, v7x: 64 MiB -> ~54 MiB), leaving headroom
    # for compiler-internal scratch.  Falls back to a 48 MiB cap (safe on every
    # generation, and above the 16/32 MiB scoped defaults) if the query fails.
    try:
        cap = pltpu.get_tpu_info().vmem_capacity_bytes
    except Exception:
        cap = None
    if not cap:
        return 48 * 1024 * 1024
    return int(cap * 0.85)


def regnn_forward(H, x, alpha_hidden, alpha_out):
    N = H.shape[0]
    precompute = N <= _SMALL_N_POWER_PRECOMPUTE
    out_t = pl.pallas_call(
        partial(regnn_kernel, precompute_high_powers=precompute),
        out_shape=jax.ShapeDtypeStruct((OUT_DIM, N), jnp.float32),
        in_specs=[
            pl.BlockSpec(memory_space=pltpu.MemorySpace.SMEM),  # alpha_hidden
            pl.BlockSpec(memory_space=pltpu.MemorySpace.SMEM),  # alpha_out
            pl.BlockSpec(memory_space=pltpu.MemorySpace.VMEM),  # G = H^T
            pl.BlockSpec(memory_space=pltpu.MemorySpace.VMEM),  # x^T
        ],
        out_specs=pl.BlockSpec(memory_space=pltpu.MemorySpace.VMEM),
        compiler_params=pltpu.CompilerParams(
            vmem_limit_bytes=_vmem_limit_bytes()),
    )(alpha_hidden, alpha_out, H.T, x.T)
    # Lane-dense (OUT_DIM, N) slab from the kernel; layout plumbing back here.
    return out_t.T


def regnn_reference(H, x, alpha_hidden, alpha_out):
    # Pure-JAX reference mirroring the PyTorch forward (serial taps, per-head
    # output).  Force true-f32 matmuls so the comparison isn't polluted by
    # XLA's reduced-precision default on TPU.
    mm = lambda a, b: jnp.matmul(a, b, precision=jax.lax.Precision.HIGHEST)
    H = (H + 1.0) / 2.0
    x = (x + 1.0) / 2.0
    for i in range(HIDDEN_LAYERS):
        p = x
        acc = alpha_hidden[i, 0] * p
        for j in range(1, FILTER_COEFF):
            p = mm(H, p)
            acc = acc + alpha_hidden[i, j] * p
        y = jnp.sum(acc, axis=1, keepdims=True)
        x = jnp.maximum(y, 0.0)
        x = x / jnp.mean(x)
    outs = []
    for i in range(OUT_DIM):
        p = x
        o = alpha_out[i, 0] * p
        for j in range(1, FILTER_COEFF):
            p = mm(H, p)
            o = o + alpha_out[i, j] * p
        outs.append(jnp.sum(o, axis=1, keepdims=True))
    out = jnp.concatenate(outs, axis=1)
    return jax.nn.softmax(out, axis=1)


if __name__ == "__main__":
    key = jax.random.PRNGKey(0)
    k1, k2, k3, k4 = jax.random.split(key, 4)

    N = 16   # number of graph nodes
    F = 1    # per-node feature width (collapses to 1 after layer 0 anyway)

    H = jax.random.uniform(k1, (N, N), jnp.float32, minval=-1.0, maxval=1.0)
    x = jax.random.uniform(k2, (N, F), jnp.float32, minval=-1.0, maxval=1.0)

    # Parameters around the module's init (ones/filter_coeff/10 = 0.02), with
    # small deterministic perturbations so per-layer / per-head weights differ
    # (catches tap/column-selection bugs that uniform init would hide).
    alpha_hidden = 0.02 + 0.002 * jax.random.uniform(
        k3, (HIDDEN_LAYERS, FILTER_COEFF), jnp.float32, minval=-1.0, maxval=1.0)
    alpha_out = 0.02 + 0.0005 * jax.random.uniform(
        k4, (OUT_DIM, FILTER_COEFF), jnp.float32, minval=-1.0, maxval=1.0)

    out = regnn_forward(H, x, alpha_hidden, alpha_out)
    jax.block_until_ready(out)

    ref = regnn_reference(H, x, alpha_hidden, alpha_out)
    assert out.shape == (N, OUT_DIM)
    # Tolerance note: the kernel evaluates the filter polynomial via
    # precomputed H powers and a row-vector/H^T formulation (mathematically
    # equivalent, different f32 rounding order); pre-softmax logits of
    # magnitude ~1e2 amplify small absolute errors through exp, and the
    # softmax denominator uses the approximate EUP reciprocal, so compare with
    # a modest relative tolerance.
    assert np.allclose(np.asarray(out), np.asarray(ref), rtol=1e-2, atol=1e-5)

    print("KERNEL_OK")
</pallas_src>

<mosaic_0001>
module attributes {stable_mosaic.version = 11 : i64} {
  func.func @regnn_kernel(%arg0: memref<5x5xf32, #tpu.memory_space<smem>>, %arg1: memref<4x5xf32, #tpu.memory_space<smem>>, %arg2: memref<16x16xf32, #tpu.memory_space<vmem>>, %arg3: memref<1x16xf32, #tpu.memory_space<vmem>>, %arg4: memref<4x16xf32, #tpu.memory_space<vmem>>) attributes {dimension_semantics = [], scalar_prefetch = 0 : i64, scratch_operands = 0 : i64, tpu.core_type = #tpu.core_type<tc>} {
    %c0 = arith.constant 0 : index
    %c0_0 = arith.constant 0 : index
    %0 = vector.load %arg2[%c0, %c0_0] : memref<16x16xf32, #tpu.memory_space<vmem>>, vector<16x16xf32>
    %cst = arith.constant 1.000000e+00 : f32
    %1 = vector.broadcast %cst : f32 to vector<16x16xf32>
    %2 = arith.addf %0, %1 : vector<16x16xf32>
    %cst_1 = arith.constant 5.000000e-01 : f32
    %3 = vector.broadcast %cst_1 : f32 to vector<16x16xf32>
    %4 = arith.mulf %2, %3 : vector<16x16xf32>
    %c0_2 = arith.constant 0 : index
    %c0_3 = arith.constant 0 : index
    %5 = vector.load %arg2[%c0_2, %c0_3] : memref<16x16xf32, #tpu.memory_space<vmem>>, vector<16x16xf32>
    tpu.vector_store %arg2[%c0_2, %c0_3], %4 {strides = array<i32>} : memref<16x16xf32, #tpu.memory_space<vmem>>, vector<16x16xf32>,
    %c0_4 = arith.constant 0 : index
    %c0_5 = arith.constant 0 : index
    %6 = vector.load %arg2[%c0_4, %c0_5] : memref<16x16xf32, #tpu.memory_space<vmem>>, vector<16x16xf32>
    %cst_6 = arith.constant dense<0.000000e+00> : vector<16x16xf32>
    %7 = tpu.matmul %6, %6, %cst_6 {dimension_numbers = #tpu.dot_dimension_numbers<[1], [0], [0], [1], [0, 0, 1, 1], [], []>} : vector<16x16xf32>, vector<16x16xf32>, vector<16x16xf32> -> vector<16x16xf32>
    %cst_7 = arith.constant dense<0.000000e+00> : vector<16x16xf32>
    %8 = tpu.matmul %7, %6, %cst_7 {dimension_numbers = #tpu.dot_dimension_numbers<[1], [0], [0], [1], [0, 0, 1, 1], [], []>} : vector<16x16xf32>, vector<16x16xf32>, vector<16x16xf32> -> vector<16x16xf32>
    %cst_8 = arith.constant dense<0.000000e+00> : vector<16x16xf32>
    %9 = tpu.matmul %7, %7, %cst_8 {dimension_numbers = #tpu.dot_dimension_numbers<[1], [0], [0], [1], [0, 0, 1, 1], [], []>} : vector<16x16xf32>, vector<16x16xf32>, vector<16x16xf32> -> vector<16x16xf32>
    %c0_9 = arith.constant 0 : index
    %c0_10 = arith.constant 0 : index
    %10 = vector.load %arg3[%c0_9, %c0_10] : memref<1x16xf32, #tpu.memory_space<vmem>>, vector<1x16xf32>
    %cst_11 = arith.constant 1.000000e+00 : f32
    %11 = vector.broadcast %cst_11 : f32 to vector<1x16xf32>
    %12 = arith.addf %10, %11 : vector<1x16xf32>
    %cst_12 = arith.constant 5.000000e-01 : f32
    %13 = vector.broadcast %cst_12 : f32 to vector<1x16xf32>
    %14 = arith.mulf %12, %13 : vector<1x16xf32>
    %cst_13 = arith.constant dense<0.000000e+00> : vector<16xf32>
    %15 = vector.multi_reduction <add>, %14, %cst_13 [0] : vector<1x16xf32> to vector<16xf32>
    %16 = vector.shape_cast %15 : vector<16xf32> to vector<1x16xf32>
    %cst_14 = arith.constant dense<0.000000e+00> : vector<1x16xf32>
    %17 = tpu.matmul %16, %6, %cst_14 {dimension_numbers = #tpu.dot_dimension_numbers<[1], [0], [0], [1], [0, 0, 1, 1], [], []>} : vector<1x16xf32>, vector<16x16xf32>, vector<1x16xf32> -> vector<1x16xf32>
    %cst_15 = arith.constant dense<0.000000e+00> : vector<1x16xf32>
    %18 = tpu.matmul %16, %7, %cst_15 {dimension_numbers = #tpu.dot_dimension_numbers<[1], [0], [0], [1], [0, 0, 1, 1], [], []>} : vector<1x16xf32>, vector<16x16xf32>, vector<1x16xf32> -> vector<1x16xf32>
    %cst_16 = arith.constant dense<0.000000e+00> : vector<1x16xf32>
    %19 = tpu.matmul %16, %8, %cst_16 {dimension_numbers = #tpu.dot_dimension_numbers<[1], [0], [0], [1], [0, 0, 1, 1], [], []>} : vector<1x16xf32>, vector<16x16xf32>, vector<1x16xf32> -> vector<1x16xf32>
    %cst_17 = arith.constant dense<0.000000e+00> : vector<1x16xf32>
    %20 = tpu.matmul %16, %9, %cst_17 {dimension_numbers = #tpu.dot_dimension_numbers<[1], [0], [0], [1], [0, 0, 1, 1], [], []>} : vector<1x16xf32>, vector<16x16xf32>, vector<1x16xf32> -> vector<1x16xf32>
    %c0_18 = arith.constant 0 : index
    %c0_19 = arith.constant 0 : index
    %21 = memref.load %arg0[%c0_18, %c0_19] : memref<5x5xf32, #tpu.memory_space<smem>>
    %22 = vector.broadcast %21 : f32 to vector<1x16xf32>
    %23 = arith.mulf %22, %16 : vector<1x16xf32>
    %c0_20 = arith.constant 0 : index
    %c1 = arith.constant 1 : index
    %24 = memref.load %arg0[%c0_20, %c1] : memref<5x5xf32, #tpu.memory_space<smem>>
    %25 = vector.broadcast %24 : f32 to vector<1x16xf32>
    %26 = arith.mulf %25, %17 : vector<1x16xf32>
    %27 = arith.addf %23, %26 : vector<1x16xf32>
    %c0_21 = arith.constant 0 : index
    %c2 = arith.constant 2 : index
    %28 = memref.load %arg0[%c0_21, %c2] : memref<5x5xf32, #tpu.memory_space<smem>>
    %29 = vector.broadcast %28 : f32 to vector<1x16xf32>
    %30 = arith.mulf %29, %18 : vector<1x16xf32>
    %31 = arith.addf %27, %30 : vector<1x16xf32>
    %c0_22 = arith.constant 0 : index
    %c3 = arith.constant 3 : index
    %32 = memref.load %arg0[%c0_22, %c3] : memref<5x5xf32, #tpu.memory_space<smem>>
    %33 = vector.broadcast %32 : f32 to vector<1x16xf32>
    %34 = arith.mulf %33, %19 : vector<1x16xf32>
    %35 = arith.addf %31, %34 : vector<1x16xf32>
    %c0_23 = arith.constant 0 : index
    %c4 = arith.constant 4 : index
    %36 = memref.load %arg0[%c0_23, %c4] : memref<5x5xf32, #tpu.memory_space<smem>>
    %37 = vector.broadcast %36 : f32 to vector<1x16xf32>
    %38 = arith.mulf %37, %20 : vector<1x16xf32>
    %39 = arith.addf %35, %38 : vector<1x16xf32>
    %cst_24 = arith.constant 0.000000e+00 : f32
    %40 = vector.broadcast %cst_24 : f32 to vector<1x16xf32>
    %41 = arith.maximumf %39, %40 : vector<1x16xf32>
    %cst_25 = arith.constant dense<0.000000e+00> : vector<1xf32>
    %42 = vector.multi_reduction <add>, %41, %cst_25 [1] : vector<1x16xf32> to vector<1xf32>
    %43 = vector.shape_cast %42 : vector<1xf32> to vector<1x1xf32>
    %cst_26 = arith.constant 1.600000e+01 : f32
    %44 = vector.broadcast %cst_26 : f32 to vector<1x1xf32>
    %45 = arith.divf %43, %44 : vector<1x1xf32>
    %46 = tpu.reciprocal %45 : vector<1x1xf32> -> vector<1x1xf32>
    %47 = vector.broadcast %46 : vector<1x1xf32> to vector<1x16xf32>
    %48 = arith.mulf %41, %47 : vector<1x16xf32>
    %cst_27 = arith.constant dense<0.000000e+00> : vector<1x16xf32>
    %49 = tpu.matmul %48, %6, %cst_27 {dimension_numbers = #tpu.dot_dimension_numbers<[1], [0], [0], [1], [0, 0, 1, 1], [], []>} : vector<1x16xf32>, vector<16x16xf32>, vector<1x16xf32> -> vector<1x16xf32>
    %cst_28 = arith.constant dense<0.000000e+00> : vector<1x16xf32>
    %50 = tpu.matmul %48, %7, %cst_28 {dimension_numbers = #tpu.dot_dimension_numbers<[1], [0], [0], [1], [0, 0, 1, 1], [], []>} : vector<1x16xf32>, vector<16x16xf32>, vector<1x16xf32> -> vector<1x16xf32>
    %cst_29 = arith.constant dense<0.000000e+00> : vector<1x16xf32>
    %51 = tpu.matmul %48, %8, %cst_29 {dimension_numbers = #tpu.dot_dimension_numbers<[1], [0], [0], [1], [0, 0, 1, 1], [], []>} : vector<1x16xf32>, vector<16x16xf32>, vector<1x16xf32> -> vector<1x16xf32>
    %cst_30 = arith.constant dense<0.000000e+00> : vector<1x16xf32>
    %52 = tpu.matmul %48, %9, %cst_30 {dimension_numbers = #tpu.dot_dimension_numbers<[1], [0], [0], [1], [0, 0, 1, 1], [], []>} : vector<1x16xf32>, vector<16x16xf32>, vector<1x16xf32> -> vector<1x16xf32>
    %c1_31 = arith.constant 1 : index
    %c0_32 = arith.constant 0 : index
    %53 = memref.load %arg0[%c1_31, %c0_32] : memref<5x5xf32, #tpu.memory_space<smem>>
    %54 = vector.broadcast %53 : f32 to vector<1x16xf32>
    %55 = arith.mulf %54, %48 : vector<1x16xf32>
    %c1_33 = arith.constant 1 : index
    %c1_34 = arith.constant 1 : index
    %56 = memref.load %arg0[%c1_33, %c1_34] : memref<5x5xf32, #tpu.memory_space<smem>>
    %57 = vector.broadcast %56 : f32 to vector<1x16xf32>
    %58 = arith.mulf %57, %49 : vector<1x16xf32>
    %59 = arith.addf %55, %58 : vector<1x16xf32>
    %c1_35 = arith.constant 1 : index
    %c2_36 = arith.constant 2 : index
    %60 = memref.load %arg0[%c1_35, %c2_36] : memref<5x5xf32, #tpu.memory_space<smem>>
    %61 = vector.broadcast %60 : f32 to vector<1x16xf32>
    %62 = arith.mulf %61, %50 : vector<1x16xf32>
    %63 = arith.addf %59, %62 : vector<1x16xf32>
    %c1_37 = arith.constant 1 : index
    %c3_38 = arith.constant 3 : index
    %64 = memref.load %arg0[%c1_37, %c3_38] : memref<5x5xf32, #tpu.memory_space<smem>>
    %65 = vector.broadcast %64 : f32 to vector<1x16xf32>
    %66 = arith.mulf %65, %51 : vector<1x16xf32>
    %67 = arith.addf %63, %66 : vector<1x16xf32>
    %c1_39 = arith.constant 1 : index
    %c4_40 = arith.constant 4 : index
    %68 = memref.load %arg0[%c1_39, %c4_40] : memref<5x5xf32, #tpu.memory_space<smem>>
    %69 = vector.broadcast %68 : f32 to vector<1x16xf32>
    %70 = arith.mulf %69, %52 : vector<1x16xf32>
    %71 = arith.addf %67, %70 : vector<1x16xf32>
    %cst_41 = arith.constant 0.000000e+00 : f32
    %72 = vector.broadcast %cst_41 : f32 to vector<1x16xf32>
    %73 = arith.maximumf %71, %72 : vector<1x16xf32>
    %cst_42 = arith.constant dense<0.000000e+00> : vector<1xf32>
    %74 = vector.multi_reduction <add>, %73, %cst_42 [1] : vector<1x16xf32> to vector<1xf32>
    %75 = vector.shape_cast %74 : vector<1xf32> to vector<1x1xf32>
    %cst_43 = arith.constant 1.600000e+01 : f32
    %76 = vector.broadcast %cst_43 : f32 to vector<1x1xf32>
    %77 = arith.divf %75, %76 : vector<1x1xf32>
    %78 = tpu.reciprocal %77 : vector<1x1xf32> -> vector<1x1xf32>
    %79 = vector.broadcast %78 : vector<1x1xf32> to vector<1x16xf32>
    %80 = arith.mulf %73, %79 : vector<1x16xf32>
    %cst_44 = arith.constant dense<0.000000e+00> : vector<1x16xf32>
    %81 = tpu.matmul %80, %6, %cst_44 {dimension_numbers = #tpu.dot_dimension_numbers<[1], [0], [0], [1], [0, 0, 1, 1], [], []>} : vector<1x16xf32>, vector<16x16xf32>, vector<1x16xf32> -> vector<1x16xf32>
    %cst_45 = arith.constant dense<0.000000e+00> : vector<1x16xf32>
    %82 = tpu.matmul %80, %7, %cst_45 {dimension_numbers = #tpu.dot_dimension_numbers<[1], [0], [0], [1], [0, 0, 1, 1], [], []>} : vector<1x16xf32>, vector<16x16xf32>, vector<1x16xf32> -> vector<1x16xf32>
    %cst_46 = arith.constant dense<0.000000e+00> : vector<1x16xf32>
    %83 = tpu.matmul %80, %8, %cst_46 {dimension_numbers = #tpu.dot_dimension_numbers<[1], [0], [0], [1], [0, 0, 1, 1], [], []>} : vector<1x16xf32>, vector<16x16xf32>, vector<1x16xf32> -> vector<1x16xf32>
    %cst_47 = arith.constant dense<0.000000e+00> : vector<1x16xf32>
    %84 = tpu.matmul %80, %9, %cst_47 {dimension_numbers = #tpu.dot_dimension_numbers<[1], [0], [0], [1], [0, 0, 1, 1], [], []>} : vector<1x16xf32>, vector<16x16xf32>, vector<1x16xf32> -> vector<1x16xf32>
    %c2_48 = arith.constant 2 : index
    %c0_49 = arith.constant 0 : index
    %85 = memref.load %arg0[%c2_48, %c0_49] : memref<5x5xf32, #tpu.memory_space<smem>>
    %86 = vector.broadcast %85 : f32 to vector<1x16xf32>
    %87 = arith.mulf %86, %80 : vector<1x16xf32>
    %c2_50 = arith.constant 2 : index
    %c1_51 = arith.constant 1 : index
    %88 = memref.load %arg0[%c2_50, %c1_51] : memref<5x5xf32, #tpu.memory_space<smem>>
    %89 = vector.broadcast %88 : f32 to vector<1x16xf32>
    %90 = arith.mulf %89, %81 : vector<1x16xf32>
    %91 = arith.addf %87, %90 : vector<1x16xf32>
    %c2_52 = arith.constant 2 : index
    %c2_53 = arith.constant 2 : index
    %92 = memref.load %arg0[%c2_52, %c2_53] : memref<5x5xf32, #tpu.memory_space<smem>>
    %93 = vector.broadcast %92 : f32 to vector<1x16xf32>
    %94 = arith.mulf %93, %82 : vector<1x16xf32>
    %95 = arith.addf %91, %94 : vector<1x16xf32>
    %c2_54 = arith.constant 2 : index
    %c3_55 = arith.constant 3 : index
    %96 = memref.load %arg0[%c2_54, %c3_55] : memref<5x5xf32, #tpu.memory_space<smem>>
    %97 = vector.broadcast %96 : f32 to vector<1x16xf32>
    %98 = arith.mulf %97, %83 : vector<1x16xf32>
    %99 = arith.addf %95, %98 : vector<1x16xf32>
    %c2_56 = arith.constant 2 : index
    %c4_57 = arith.constant 4 : index
    %100 = memref.load %arg0[%c2_56, %c4_57] : memref<5x5xf32, #tpu.memory_space<smem>>
    %101 = vector.broadcast %100 : f32 to vector<1x16xf32>
    %102 = arith.mulf %101, %84 : vector<1x16xf32>
    %103 = arith.addf %99, %102 : vector<1x16xf32>
    %cst_58 = arith.constant 0.000000e+00 : f32
    %104 = vector.broadcast %cst_58 : f32 to vector<1x16xf32>
    %105 = arith.maximumf %103, %104 : vector<1x16xf32>
    %cst_59 = arith.constant dense<0.000000e+00> : vector<1xf32>
    %106 = vector.multi_reduction <add>, %105, %cst_59 [1] : vector<1x16xf32> to vector<1xf32>
    %107 = vector.shape_cast %106 : vector<1xf32> to vector<1x1xf32>
    %cst_60 = arith.constant 1.600000e+01 : f32
    %108 = vector.broadcast %cst_60 : f32 to vector<1x1xf32>
    %109 = arith.divf %107, %108 : vector<1x1xf32>
    %110 = tpu.reciprocal %109 : vector<1x1xf32> -> vector<1x1xf32>
    %111 = vector.broadcast %110 : vector<1x1xf32> to vector<1x16xf32>
    %112 = arith.mulf %105, %111 : vector<1x16xf32>
    %cst_61 = arith.constant dense<0.000000e+00> : vector<1x16xf32>
    %113 = tpu.matmul %112, %6, %cst_61 {dimension_numbers = #tpu.dot_dimension_numbers<[1], [0], [0], [1], [0, 0, 1, 1], [], []>} : vector<1x16xf32>, vector<16x16xf32>, vector<1x16xf32> -> vector<1x16xf32>
    %cst_62 = arith.constant dense<0.000000e+00> : vector<1x16xf32>
    %114 = tpu.matmul %112, %7, %cst_62 {dimension_numbers = #tpu.dot_dimension_numbers<[1], [0], [0], [1], [0, 0, 1, 1], [], []>} : vector<1x16xf32>, vector<16x16xf32>, vector<1x16xf32> -> vector<1x16xf32>
    %cst_63 = arith.constant dense<0.000000e+00> : vector<1x16xf32>
    %115 = tpu.matmul %112, %8, %cst_63 {dimension_numbers = #tpu.dot_dimension_numbers<[1], [0], [0], [1], [0, 0, 1, 1], [], []>} : vector<1x16xf32>, vector<16x16xf32>, vector<1x16xf32> -> vector<1x16xf32>
    %cst_64 = arith.constant dense<0.000000e+00> : vector<1x16xf32>
    %116 = tpu.matmul %112, %9, %cst_64 {dimension_numbers = #tpu.dot_dimension_numbers<[1], [0], [0], [1], [0, 0, 1, 1], [], []>} : vector<1x16xf32>, vector<16x16xf32>, vector<1x16xf32> -> vector<1x16xf32>
    %c3_65 = arith.constant 3 : index
    %c0_66 = arith.constant 0 : index
    %117 = memref.load %arg0[%c3_65, %c0_66] : memref<5x5xf32, #tpu.memory_space<smem>>
    %118 = vector.broadcast %117 : f32 to vector<1x16xf32>
    %119 = arith.mulf %118, %112 : vector<1x16xf32>
    %c3_67 = arith.constant 3 : index
    %c1_68 = arith.constant 1 : index
    %120 = memref.load %arg0[%c3_67, %c1_68] : memref<5x5xf32, #tpu.memory_space<smem>>
    %121 = vector.broadcast %120 : f32 to vector<1x16xf32>
    %122 = arith.mulf %121, %113 : vector<1x16xf32>
    %123 = arith.addf %119, %122 : vector<1x16xf32>
    %c3_69 = arith.constant 3 : index
    %c2_70 = arith.constant 2 : index
    %124 = memref.load %arg0[%c3_69, %c2_70] : memref<5x5xf32, #tpu.memory_space<smem>>
    %125 = vector.broadcast %124 : f32 to vector<1x16xf32>
    %126 = arith.mulf %125, %114 : vector<1x16xf32>
    %127 = arith.addf %123, %126 : vector<1x16xf32>
    %c3_71 = arith.constant 3 : index
    %c3_72 = arith.constant 3 : index
    %128 = memref.load %arg0[%c3_71, %c3_72] : memref<5x5xf32, #tpu.memory_space<smem>>
    %129 = vector.broadcast %128 : f32 to vector<1x16xf32>
    %130 = arith.mulf %129, %115 : vector<1x16xf32>
    %131 = arith.addf %127, %130 : vector<1x16xf32>
    %c3_73 = arith.constant 3 : index
    %c4_74 = arith.constant 4 : index
    %132 = memref.load %arg0[%c3_73, %c4_74] : memref<5x5xf32, #tpu.memory_space<smem>>
    %133 = vector.broadcast %132 : f32 to vector<1x16xf32>
    %134 = arith.mulf %133, %116 : vector<1x16xf32>
    %135 = arith.addf %131, %134 : vector<1x16xf32>
    %cst_75 = arith.constant 0.000000e+00 : f32
    %136 = vector.broadcast %cst_75 : f32 to vector<1x16xf32>
    %137 = arith.maximumf %135, %136 : vector<1x16xf32>
    %cst_76 = arith.constant dense<0.000000e+00> : vector<1xf32>
    %138 = vector.multi_reduction <add>, %137, %cst_76 [1] : vector<1x16xf32> to vector<1xf32>
    %139 = vector.shape_cast %138 : vector<1xf32> to vector<1x1xf32>
    %cst_77 = arith.constant 1.600000e+01 : f32
    %140 = vector.broadcast %cst_77 : f32 to vector<1x1xf32>
    %141 = arith.divf %139, %140 : vector<1x1xf32>
    %142 = tpu.reciprocal %141 : vector<1x1xf32> -> vector<1x1xf32>
    %143 = vector.broadcast %142 : vector<1x1xf32> to vector<1x16xf32>
    %144 = arith.mulf %137, %143 : vector<1x16xf32>
    %cst_78 = arith.constant dense<0.000000e+00> : vector<1x16xf32>
    %145 = tpu.matmul %144, %6, %cst_78 {dimension_numbers = #tpu.dot_dimension_numbers<[1], [0], [0], [1], [0, 0, 1, 1], [], []>} : vector<1x16xf32>, vector<16x16xf32>, vector<1x16xf32> -> vector<1x16xf32>
    %cst_79 = arith.constant dense<0.000000e+00> : vector<1x16xf32>
    %146 = tpu.matmul %144, %7, %cst_79 {dimension_numbers = #tpu.dot_dimension_numbers<[1], [0], [0], [1], [0, 0, 1, 1], [], []>} : vector<1x16xf32>, vector<16x16xf32>, vector<1x16xf32> -> vector<1x16xf32>
    %cst_80 = arith.constant dense<0.000000e+00> : vector<1x16xf32>
    %147 = tpu.matmul %144, %8, %cst_80 {dimension_numbers = #tpu.dot_dimension_numbers<[1], [0], [0], [1], [0, 0, 1, 1], [], []>} : vector<1x16xf32>, vector<16x16xf32>, vector<1x16xf32> -> vector<1x16xf32>
    %cst_81 = arith.constant dense<0.000000e+00> : vector<1x16xf32>
    %148 = tpu.matmul %144, %9, %cst_81 {dimension_numbers = #tpu.dot_dimension_numbers<[1], [0], [0], [1], [0, 0, 1, 1], [], []>} : vector<1x16xf32>, vector<16x16xf32>, vector<1x16xf32> -> vector<1x16xf32>
    %c4_82 = arith.constant 4 : index
    %c0_83 = arith.constant 0 : index
    %149 = memref.load %arg0[%c4_82, %c0_83] : memref<5x5xf32, #tpu.memory_space<smem>>
    %150 = vector.broadcast %149 : f32 to vector<1x16xf32>
    %151 = arith.mulf %150, %144 : vector<1x16xf32>
    %c4_84 = arith.constant 4 : index
    %c1_85 = arith.constant 1 : index
    %152 = memref.load %arg0[%c4_84, %c1_85] : memref<5x5xf32, #tpu.memory_space<smem>>
    %153 = vector.broadcast %152 : f32 to vector<1x16xf32>
    %154 = arith.mulf %153, %145 : vector<1x16xf32>
    %155 = arith.addf %151, %154 : vector<1x16xf32>
    %c4_86 = arith.constant 4 : index
    %c2_87 = arith.constant 2 : index
    %156 = memref.load %arg0[%c4_86, %c2_87] : memref<5x5xf32, #tpu.memory_space<smem>>
    %157 = vector.broadcast %156 : f32 to vector<1x16xf32>
    %158 = arith.mulf %157, %146 : vector<1x16xf32>
    %159 = arith.addf %155, %158 : vector<1x16xf32>
    %c4_88 = arith.constant 4 : index
    %c3_89 = arith.constant 3 : index
    %160 = memref.load %arg0[%c4_88, %c3_89] : memref<5x5xf32, #tpu.memory_space<smem>>
    %161 = vector.broadcast %160 : f32 to vector<1x16xf32>
    %162 = arith.mulf %161, %147 : vector<1x16xf32>
    %163 = arith.addf %159, %162 : vector<1x16xf32>
    %c4_90 = arith.constant 4 : index
    %c4_91 = arith.constant 4 : index
    %164 = memref.load %arg0[%c4_90, %c4_91] : memref<5x5xf32, #tpu.memory_space<smem>>
    %165 = vector.broadcast %164 : f32 to vector<1x16xf32>
    %166 = arith.mulf %165, %148 : vector<1x16xf32>
    %167 = arith.addf %163, %166 : vector<1x16xf32>
    %cst_92 = arith.constant 0.000000e+00 : f32
    %168 = vector.broadcast %cst_92 : f32 to vector<1x16xf32>
    %169 = arith.maximumf %167, %168 : vector<1x16xf32>
    %cst_93 = arith.constant dense<0.000000e+00> : vector<1xf32>
    %170 = vector.multi_reduction <add>, %169, %cst_93 [1] : vector<1x16xf32> to vector<1xf32>
    %171 = vector.shape_cast %170 : vector<1xf32> to vector<1x1xf32>
    %cst_94 = arith.constant 1.600000e+01 : f32
    %172 = vector.broadcast %cst_94 : f32 to vector<1x1xf32>
    %173 = arith.divf %171, %172 : vector<1x1xf32>
    %174 = tpu.reciprocal %173 : vector<1x1xf32> -> vector<1x1xf32>
    %175 = vector.broadcast %174 : vector<1x1xf32> to vector<1x16xf32>
    %176 = arith.mulf %169, %175 : vector<1x16xf32>
    %cst_95 = arith.constant dense<0.000000e+00> : vector<1x16xf32>
    %177 = tpu.matmul %176, %6, %cst_95 {dimension_numbers = #tpu.dot_dimension_numbers<[1], [0], [0], [1], [0, 0, 1, 1], [], []>} : vector<1x16xf32>, vector<16x16xf32>, vector<1x16xf32> -> vector<1x16xf32>
    %cst_96 = arith.constant dense<0.000000e+00> : vector<1x16xf32>
    %178 = tpu.matmul %176, %7, %cst_96 {dimension_numbers = #tpu.dot_dimension_numbers<[1], [0], [0], [1], [0, 0, 1, 1], [], []>} : vector<1x16xf32>, vector<16x16xf32>, vector<1x16xf32> -> vector<1x16xf32>
    %cst_97 = arith.constant dense<0.000000e+00> : vector<1x16xf32>
    %179 = tpu.matmul %176, %8, %cst_97 {dimension_numbers = #tpu.dot_dimension_numbers<[1], [0], [0], [1], [0, 0, 1, 1], [], []>} : vector<1x16xf32>, vector<16x16xf32>, vector<1x16xf32> -> vector<1x16xf32>
    %cst_98 = arith.constant dense<0.000000e+00> : vector<1x16xf32>
    %180 = tpu.matmul %176, %9, %cst_98 {dimension_numbers = #tpu.dot_dimension_numbers<[1], [0], [0], [1], [0, 0, 1, 1], [], []>} : vector<1x16xf32>, vector<16x16xf32>, vector<1x16xf32> -> vector<1x16xf32>
    %c0_99 = arith.constant 0 : index
    %c0_100 = arith.constant 0 : index
    %181 = memref.load %arg1[%c0_99, %c0_100] : memref<4x5xf32, #tpu.memory_space<smem>>
    %182 = vector.broadcast %181 : f32 to vector<1x16xf32>
    %183 = arith.mulf %182, %176 : vector<1x16xf32>
    %c0_101 = arith.constant 0 : index
    %c1_102 = arith.constant 1 : index
    %184 = memref.load %arg1[%c0_101, %c1_102] : memref<4x5xf32, #tpu.memory_space<smem>>
    %185 = vector.broadcast %184 : f32 to vector<1x16xf32>
    %186 = arith.mulf %185, %177 : vector<1x16xf32>
    %187 = arith.addf %183, %186 : vector<1x16xf32>
    %c0_103 = arith.constant 0 : index
    %c2_104 = arith.constant 2 : index
    %188 = memref.load %arg1[%c0_103, %c2_104] : memref<4x5xf32, #tpu.memory_space<smem>>
    %189 = vector.broadcast %188 : f32 to vector<1x16xf32>
    %190 = arith.mulf %189, %178 : vector<1x16xf32>
    %191 = arith.addf %187, %190 : vector<1x16xf32>
    %c0_105 = arith.constant 0 : index
    %c3_106 = arith.constant 3 : index
    %192 = memref.load %arg1[%c0_105, %c3_106] : memref<4x5xf32, #tpu.memory_space<smem>>
    %193 = vector.broadcast %192 : f32 to vector<1x16xf32>
    %194 = arith.mulf %193, %179 : vector<1x16xf32>
    %195 = arith.addf %191, %194 : vector<1x16xf32>
    %c0_107 = arith.constant 0 : index
    %c4_108 = arith.constant 4 : index
    %196 = memref.load %arg1[%c0_107, %c4_108] : memref<4x5xf32, #tpu.memory_space<smem>>
    %197 = vector.broadcast %196 : f32 to vector<1x16xf32>
    %198 = arith.mulf %197, %180 : vector<1x16xf32>
    %199 = arith.addf %195, %198 : vector<1x16xf32>
    %c1_109 = arith.constant 1 : index
    %c0_110 = arith.constant 0 : index
    %200 = memref.load %arg1[%c1_109, %c0_110] : memref<4x5xf32, #tpu.memory_space<smem>>
    %201 = vector.broadcast %200 : f32 to vector<1x16xf32>
    %202 = arith.mulf %201, %176 : vector<1x16xf32>
    %c1_111 = arith.constant 1 : index
    %c1_112 = arith.constant 1 : index
    %203 = memref.load %arg1[%c1_111, %c1_112] : memref<4x5xf32, #tpu.memory_space<smem>>
    %204 = vector.broadcast %203 : f32 to vector<1x16xf32>
    %205 = arith.mulf %204, %177 : vector<1x16xf32>
    %206 = arith.addf %202, %205 : vector<1x16xf32>
    %c1_113 = arith.constant 1 : index
    %c2_114 = arith.constant 2 : index
    %207 = memref.load %arg1[%c1_113, %c2_114] : memref<4x5xf32, #tpu.memory_space<smem>>
    %208 = vector.broadcast %207 : f32 to vector<1x16xf32>
    %209 = arith.mulf %208, %178 : vector<1x16xf32>
    %210 = arith.addf %206, %209 : vector<1x16xf32>
    %c1_115 = arith.constant 1 : index
    %c3_116 = arith.constant 3 : index
    %211 = memref.load %arg1[%c1_115, %c3_116] : memref<4x5xf32, #tpu.memory_space<smem>>
    %212 = vector.broadcast %211 : f32 to vector<1x16xf32>
    %213 = arith.mulf %212, %179 : vector<1x16xf32>
    %214 = arith.addf %210, %213 : vector<1x16xf32>
    %c1_117 = arith.constant 1 : index
    %c4_118 = arith.constant 4 : index
    %215 = memref.load %arg1[%c1_117, %c4_118] : memref<4x5xf32, #tpu.memory_space<smem>>
    %216 = vector.broadcast %215 : f32 to vector<1x16xf32>
    %217 = arith.mulf %216, %180 : vector<1x16xf32>
    %218 = arith.addf %214, %217 : vector<1x16xf32>
    %c2_119 = arith.constant 2 : index
    %c0_120 = arith.constant 0 : index
    %219 = memref.load %arg1[%c2_119, %c0_120] : memref<4x5xf32, #tpu.memory_space<smem>>
    %220 = vector.broadcast %219 : f32 to vector<1x16xf32>
    %221 = arith.mulf %220, %176 : vector<1x16xf32>
    %c2_121 = arith.constant 2 : index
    %c1_122 = arith.constant 1 : index
    %222 = memref.load %arg1[%c2_121, %c1_122] : memref<4x5xf32, #tpu.memory_space<smem>>
    %223 = vector.broadcast %222 : f32 to vector<1x16xf32>
    %224 = arith.mulf %223, %177 : vector<1x16xf32>
    %225 = arith.addf %221, %224 : vector<1x16xf32>
    %c2_123 = arith.constant 2 : index
    %c2_124 = arith.constant 2 : index
    %226 = memref.load %arg1[%c2_123, %c2_124] : memref<4x5xf32, #tpu.memory_space<smem>>
    %227 = vector.broadcast %226 : f32 to vector<1x16xf32>
    %228 = arith.mulf %227, %178 : vector<1x16xf32>
    %229 = arith.addf %225, %228 : vector<1x16xf32>
    %c2_125 = arith.constant 2 : index
    %c3_126 = arith.constant 3 : index
    %230 = memref.load %arg1[%c2_125, %c3_126] : memref<4x5xf32, #tpu.memory_space<smem>>
    %231 = vector.broadcast %230 : f32 to vector<1x16xf32>
    %232 = arith.mulf %231, %179 : vector<1x16xf32>
    %233 = arith.addf %229, %232 : vector<1x16xf32>
    %c2_127 = arith.constant 2 : index
    %c4_128 = arith.constant 4 : index
    %234 = memref.load %arg1[%c2_127, %c4_128] : memref<4x5xf32, #tpu.memory_space<smem>>
    %235 = vector.broadcast %234 : f32 to vector<1x16xf32>
    %236 = arith.mulf %235, %180 : vector<1x16xf32>
    %237 = arith.addf %233, %236 : vector<1x16xf32>
    %c3_129 = arith.constant 3 : index
    %c0_130 = arith.constant 0 : index
    %238 = memref.load %arg1[%c3_129, %c0_130] : memref<4x5xf32, #tpu.memory_space<smem>>
    %239 = vector.broadcast %238 : f32 to vector<1x16xf32>
    %240 = arith.mulf %239, %176 : vector<1x16xf32>
    %c3_131 = arith.constant 3 : index
    %c1_132 = arith.constant 1 : index
    %241 = memref.load %arg1[%c3_131, %c1_132] : memref<4x5xf32, #tpu.memory_space<smem>>
    %242 = vector.broadcast %241 : f32 to vector<1x16xf32>
    %243 = arith.mulf %242, %177 : vector<1x16xf32>
    %244 = arith.addf %240, %243 : vector<1x16xf32>
    %c3_133 = arith.constant 3 : index
    %c2_134 = arith.constant 2 : index
    %245 = memref.load %arg1[%c3_133, %c2_134] : memref<4x5xf32, #tpu.memory_space<smem>>
    %246 = vector.broadcast %245 : f32 to vector<1x16xf32>
    %247 = arith.mulf %246, %178 : vector<1x16xf32>
    %248 = arith.addf %244, %247 : vector<1x16xf32>
    %c3_135 = arith.constant 3 : index
    %c3_136 = arith.constant 3 : index
    %249 = memref.load %arg1[%c3_135, %c3_136] : memref<4x5xf32, #tpu.memory_space<smem>>
    %250 = vector.broadcast %249 : f32 to vector<1x16xf32>
    %251 = arith.mulf %250, %179 : vector<1x16xf32>
    %252 = arith.addf %248, %251 : vector<1x16xf32>
    %c3_137 = arith.constant 3 : index
    %c4_138 = arith.constant 4 : index
    %253 = memref.load %arg1[%c3_137, %c4_138] : memref<4x5xf32, #tpu.memory_space<smem>>
    %254 = vector.broadcast %253 : f32 to vector<1x16xf32>
    %255 = arith.mulf %254, %180 : vector<1x16xf32>
    %256 = arith.addf %252, %255 : vector<1x16xf32>
    %257 = tpu.concatenate %199, %218, %237, %256 in 0 : vector<1x16xf32>, vector<1x16xf32>, vector<1x16xf32>, vector<1x16xf32> -> vector<4x16xf32>
    %cst_139 = arith.constant dense<0xFF800000> : vector<16xf32>
    %258 = vector.multi_reduction <maximumf>, %257, %cst_139 [0] : vector<4x16xf32> to vector<16xf32>
    %259 = vector.shape_cast %258 : vector<16xf32> to vector<1x16xf32>
    %260 = vector.broadcast %259 : vector<1x16xf32> to vector<4x16xf32>
    %261 = arith.subf %257, %260 : vector<4x16xf32>
    %262 = math.exp %261 : vector<4x16xf32>
    %cst_140 = arith.constant dense<0.000000e+00> : vector<16xf32>
    %263 = vector.multi_reduction <add>, %262, %cst_140 [0] : vector<4x16xf32> to vector<16xf32>
    %264 = vector.shape_cast %263 : vector<16xf32> to vector<1x16xf32>
    %265 = tpu.reciprocal %264 {approx = true} : vector<1x16xf32> -> vector<1x16xf32>
    %266 = vector.broadcast %265 : vector<1x16xf32> to vector<4x16xf32>
    %267 = arith.mulf %262, %266 : vector<4x16xf32>
    %c0_141 = arith.constant 0 : index
    %c0_142 = arith.constant 0 : index
    %268 = vector.load %arg4[%c0_141, %c0_142] : memref<4x16xf32, #tpu.memory_space<vmem>>, vector<4x16xf32>
    tpu.vector_store %arg4[%c0_141, %c0_142], %267 {strides = array<i32>} : memref<4x16xf32, #tpu.memory_space<vmem>>, vector<4x16xf32>,
    return
  }
}

</mosaic_0001>

<llo_original>
// kernel: tpu_custom_call.1
$region0: #{tpu_custom_call.1}
  #allocation0 [shape = 'u32[]', space=smem, size = 0x4, offset = 0x4, fixed_abs, tag = 'smem constant byte address 0x4 - core index']
  #allocation1 [shape = 'u32[144,128]{1,0:T(1,128)}', space=vmem, size = 0x12000, scoped, tag = 'internal scratch']
  %s0 = inlined_call_operand.hbm [shape: f32[5,5], index: 0, kind: input, shape index: {}]
  %s1 = inlined_call_operand.hbm [shape: f32[4,5], index: 1, kind: input, shape index: {}]
  %s2 = inlined_call_operand.hbm [shape: f32[16,16], index: 2, kind: input, shape index: {}]
  %s3 = inlined_call_operand.vmem [shape: f32[1,16], index: 3, kind: input, shape index: {}]
  %s4 = inlined_call_operand.hbm [shape: f32[4,16], index: 4, kind: output, shape index: {}]
  %s5 = sld [smem:[#allocation0]]
  $region38: #{tpu_custom_call.1} parent=0
    _
  %s7 = ssub.s32 1, %s5
  %s8 = scalar_select 0, %s7, %s5
  $region1: #{tpu_custom_call.1} parent=0
    #allocation2 [shape = 'u8[4096]{0}', space=smem, size = 0x1000, scoped, tag = 'input window, operand 0, single buffered']
    #allocation3 [shape = 's32[1]{0}', space=sflag, size = 0x4, scoped, tag = 'scoped memory for tpu_custom_call.1']
    #allocation4 [shape = 's32[1]{0}', space=sflag, size = 0x4, scoped, tag = 'scoped memory for tpu_custom_call.1']
    #allocation5 [shape = 's32[1]{0}', space=sflag, size = 0x4, scoped, tag = 'scoped memory for tpu_custom_call.1']
    #allocation6 [shape = 'u8[2048]{0}', space=smem, size = 0x800, scoped, tag = 'input window, operand 1, single buffered']
    #allocation7 [shape = 's32[1]{0}', space=sflag, size = 0x4, scoped, tag = 'scoped memory for tpu_custom_call.1']
    #allocation8 [shape = 'u8[8192]{0}', space=vmem, size = 0x2000, scoped, tag = 'input window, operand 2, single buffered']
    #allocation9 [shape = 'u8[2048]{0}', space=vmem, size = 0x800, scoped, tag = 'output window, operand 0, single buffered']
    %9 = vsyncpa [#allocation5], 0
    %10 = vsyncpa [#allocation7], 0
    %11 = vsyncpa [#allocation3], 0
    %12 = vsyncpa [#allocation4], 0
    // Predicated region
    $region2: #{tpu_custom_call.1} parent=1 // pred_check
      _
    $region3: #{tpu_custom_call.1} parent=1 // pred_check_branch
      %14 = sbr.rel (0) target = $region5
    $region4: #{tpu_custom_call.1} parent=1 // pred_region
      %s16 = ssub.s32 128, 128
      %17 = vsyncadd [#allocation5], %s16
      %20 = dma.hbm_to_smem %s0, 128, [#allocation2], [#allocation5]
    $region5: #{tpu_custom_call.1} parent=1 // pred_fallthru
      _
    // Predicated region
    $region6: #{tpu_custom_call.1} parent=1 // pred_check
      _
    $region7: #{tpu_custom_call.1} parent=1 // pred_check_branch
      %22 = sbr.rel (0) target = $region9
    $region8: #{tpu_custom_call.1} parent=1 // pred_region
      %s24 = ssub.s32 64, 64
      %25 = vsyncadd [#allocation7], %s24
      %28 = dma.hbm_to_smem %s1, 64, [#allocation6], [#allocation7]
    $region9: #{tpu_custom_call.1} parent=1 // pred_fallthru
      _
    // Predicated region
    $region10: #{tpu_custom_call.1} parent=1 // pred_check
      _
    $region11: #{tpu_custom_call.1} parent=1 // pred_check_branch
      %30 = sbr.rel (0) target = $region13
    $region12: #{tpu_custom_call.1} parent=1 // pred_region
      %s32 = ssub.s32 256, 256
      %33 = vsyncadd [#allocation3], %s32
      %s34 = sshll.u32 [#allocation8], 4
      %s35 = int_to_ptr.vmem [resolvable:$true] %s34
      %40 = dma.hbm_to_vmem [thread:$0]  %s2, 256, %s35, [#allocation3], 128, 128, 8
    $region13: #{tpu_custom_call.1} parent=1 // pred_fallthru
      _
    // Predicated region
    $region14: #{tpu_custom_call.1} parent=1 // pred_check
      _
    $region15: #{tpu_custom_call.1} parent=1 // pred_check_branch
      %42 = sbr.rel (0) target = $region17
    $region16: #{tpu_custom_call.1} parent=1 // pred_region
      _
    $region17: #{tpu_custom_call.1} parent=1 // pred_fallthru
      _
    // Predicated region
    $region18: #{tpu_custom_call.1} parent=1 // pred_check
      _
    $region19: #{tpu_custom_call.1} parent=1 // pred_check_branch
      %44 = sbr.rel (0) target = $region21
    $region20: #{tpu_custom_call.1} parent=1 // pred_region
      %45 = dma.done [#allocation5], 128
    $region21: #{tpu_custom_call.1} parent=1 // pred_fallthru
      _
    // Predicated region
    $region22: #{tpu_custom_call.1} parent=1 // pred_check
      _
    $region23: #{tpu_custom_call.1} parent=1 // pred_check_branch
      %47 = sbr.rel (0) target = $region25
    $region24: #{tpu_custom_call.1} parent=1 // pred_region
      %48 = dma.done [#allocation7], 64
    $region25: #{tpu_custom_call.1} parent=1 // pred_fallthru
      _
    // Predicated region
    $region26: #{tpu_custom_call.1} parent=1 // pred_check
      _
    $region27: #{tpu_custom_call.1} parent=1 // pred_check_branch
      %50 = sbr.rel (0) target = $region29
    $region28: #{tpu_custom_call.1} parent=1 // pred_region
      %51 = dma.done [#allocation3], 256
    $region29: #{tpu_custom_call.1} parent=1 // pred_fallthru
      _
    %52 = sfence
    %v53 = vld [vmem:[#allocation8] sm:$0xff]
    %v54 = vld [vmem:[#allocation8 + $0x8] sm:$0xff]
    %v55 = vadd.f32 %v53, 1.0
    %v56 = vadd.f32 %v54, 1.0
    %v57 = vmul.f32 %v55, 0.5
    %v58 = vmul.f32 %v56, 0.5
    %vm59 = vcmask 130048
    %60 = vst.msk [vmem:[#allocation8] sm:$0xff] %vm59, %v57
    %61 = vst.msk [vmem:[#allocation8 + $0x8] sm:$0xff] %vm59, %v58
    %v62 = vld [vmem:[#allocation8] sm:$0xff]
    %v63 = vld [vmem:[#allocation8 + $0x8] sm:$0xff]
    %v65 = vsel %vm59, %v62, 0
    %v68 = vsel %vm59, %v63, 0
    %70 = vmatprep.subr.mxu0 0.0
    %71 = vmatpush1.msra.mxu0 0.0
    %72 = vmatprep.subr.mxu0 0.0
    %73 = vmatpush1.msra.mxu0 0.0
    %74 = vmatprep.subr.mxu0 0.0
    %75 = vmatpush1.msra.mxu0 0.0
    %76 = vmatprep.subr.mxu0 0.0
    %77 = vmatpush1.msra.mxu0 0.0
    %78 = vmatprep.subr.mxu0 0.0
    %79 = vmatpush1.msra.mxu0 0.0
    %80 = vmatprep.subr.mxu0 0.0
    %81 = vmatpush1.msra.mxu0 0.0
    %82 = vmatprep.subr.mxu0 0.0
    %83 = vmatpush1.msra.mxu0 0.0
    %84 = vmatprep.subr.mxu0 0.0
    %85 = vmatpush1.msra.mxu0 0.0
    %86 = vmatprep.subr.mxu0 0.0
    %87 = vmatpush1.msra.mxu0 0.0
    %88 = vmatprep.subr.mxu0 0.0
    %89 = vmatpush1.msra.mxu0 0.0
    %90 = vmatprep.subr.mxu0 0.0
    %91 = vmatpush1.msra.mxu0 0.0
    %92 = vmatprep.subr.mxu0 0.0
    %93 = vmatpush1.msra.mxu0 0.0
    %94 = vmatprep.subr.mxu0 0.0
    %95 = vmatpush1.msra.mxu0 0.0
    %96 = vmatprep.subr.mxu0 0.0
    %97 = vmatpush1.msra.mxu0 0.0
    %98 = vmatprep.subr.mxu0 0.0
    %99 = vmatpush1.msra.mxu0 %v63
    %100 = vmatprep.subr.mxu0 0.0
    %101 = vmatpush1.msra.mxu0 %v62
    %102 = vmatprep.subr.mxu0 0.0
    %103 = vmatpush2.msra.mxu0 0.0
    %104 = vmatprep.subr.mxu0 0.0
    %105 = vmatpush2.msra.mxu0 0.0
    %106 = vmatprep.subr.mxu0 0.0
    %107 = vmatpush2.msra.mxu0 0.0
    %108 = vmatprep.subr.mxu0 0.0
    %109 = vmatpush2.msra.mxu0 0.0
    %110 = vmatprep.subr.mxu0 0.0
    %111 = vmatpush2.msra.mxu0 0.0
    %112 = vmatprep.subr.mxu0 0.0
    %113 = vmatpush2.msra.mxu0 0.0
    %114 = vmatprep.subr.mxu0 0.0
    %115 = vmatpush2.msra.mxu0 0.0
    %116 = vmatprep.subr.mxu0 0.0
    %117 = vmatpush2.msra.mxu0 0.0
    %118 = vmatprep.subr.mxu0 0.0
    %119 = vmatpush2.msra.mxu0 0.0
    %120 = vmatprep.subr.mxu0 0.0
    %121 = vmatpush2.msra.mxu0 0.0
    %122 = vmatprep.subr.mxu0 0.0
    %123 = vmatpush2.msra.mxu0 0.0
    %124 = vmatprep.subr.mxu0 0.0
    %125 = vmatpush2.msra.mxu0 0.0
    %126 = vmatprep.subr.mxu0 0.0
    %127 = vmatpush2.msra.mxu0 0.0
    %128 = vmatprep.subr.mxu0 0.0
    %129 = vmatpush2.msra.mxu0 0.0
    %130 = vmatprep.subr.mxu0 0.0
    %131 = vmatpush2.msra.mxu0 0.0
    %132 = vmatprep.subr.mxu0 0.0
    %133 = vmatpush2.msra.mxu0 0.0
    %134 = vmatprep.mubr.f32.mxu0 0.0
    %135 = vmatmul.mubr.f32.gmra.mxu0 %v65
    %v136 = vpop.f32.mrf.mxu0
    %v137 = vadd.f32 0.0, %v136
    %v138 = vpop.f32.mrf.mxu0
    %139 = vmatprep.mubr.f32.mxu0 0.0
    %140 = vmatmul.mubr.f32.gmra.mxu0 %v68
    %v141 = vpop.f32.mrf.mxu0
    %v142 = vadd.f32 0.0, %v141
    %v143 = vpop.f32.mrf.mxu0
    %144 = vdwg.mxu0
    %v146 = vsel %vm59, %v137, 0
    %v149 = vsel %vm59, %v142, 0
    %151 = vmatprep.subr.mxu0 0.0
    %152 = vmatpush1.msra.mxu0 0.0
    %153 = vmatprep.subr.mxu0 0.0
    %154 = vmatpush1.msra.mxu0 0.0
    %155 = vmatprep.subr.mxu0 0.0
    %156 = vmatpush1.msra.mxu0 0.0
    %157 = vmatprep.subr.mxu0 0.0
    %158 = vmatpush1.msra.mxu0 0.0
    %159 = vmatprep.subr.mxu0 0.0
    %160 = vmatpush1.msra.mxu0 0.0
    %161 = vmatprep.subr.mxu0 0.0
    %162 = vmatpush1.msra.mxu0 0.0
    %163 = vmatprep.subr.mxu0 0.0
    %164 = vmatpush1.msra.mxu0 0.0
    %165 = vmatprep.subr.mxu0 0.0
    %166 = vmatpush1.msra.mxu0 0.0
    %167 = vmatprep.subr.mxu0 0.0
    %168 = vmatpush1.msra.mxu0 0.0
    %169 = vmatprep.subr.mxu0 0.0
    %170 = vmatpush1.msra.mxu0 0.0
    %171 = vmatprep.subr.mxu0 0.0
    %172 = vmatpush1.msra.mxu0 0.0
    %173 = vmatprep.subr.mxu0 0.0
    %174 = vmatpush1.msra.mxu0 0.0
    %175 = vmatprep.subr.mxu0 0.0
    %176 = vmatpush1.msra.mxu0 0.0
    %177 = vmatprep.subr.mxu0 0.0
    %178 = vmatpush1.msra.mxu0 0.0
    %179 = vmatprep.subr.mxu0 0.0
    %180 = vmatpush1.msra.mxu0 %v63
    %181 = vmatprep.subr.mxu0 0.0
    %182 = vmatpush1.msra.mxu0 %v62
    %183 = vmatprep.subr.mxu0 0.0
    %184 = vmatpush2.msra.mxu0 0.0
    %185 = vmatprep.subr.mxu0 0.0
    %186 = vmatpush2.msra.mxu0 0.0
    %187 = vmatprep.subr.mxu0 0.0
    %188 = vmatpush2.msra.mxu0 0.0
    %189 = vmatprep.subr.mxu0 0.0
    %190 = vmatpush2.msra.mxu0 0.0
    %191 = vmatprep.subr.mxu0 0.0
    %192 = vmatpush2.msra.mxu0 0.0
    %193 = vmatprep.subr.mxu0 0.0
    %194 = vmatpush2.msra.mxu0 0.0
    %195 = vmatprep.subr.mxu0 0.0
    %196 = vmatpush2.msra.mxu0 0.0
    %197 = vmatprep.subr.mxu0 0.0
    %198 = vmatpush2.msra.mxu0 0.0
    %199 = vmatprep.subr.mxu0 0.0
    %200 = vmatpush2.msra.mxu0 0.0
    %201 = vmatprep.subr.mxu0 0.0
    %202 = vmatpush2.msra.mxu0 0.0
    %203 = vmatprep.subr.mxu0 0.0
    %204 = vmatpush2.msra.mxu0 0.0
    %205 = vmatprep.subr.mxu0 0.0
    %206 = vmatpush2.msra.mxu0 0.0
    %207 = vmatprep.subr.mxu0 0.0
    %208 = vmatpush2.msra.mxu0 0.0
    %209 = vmatprep.subr.mxu0 0.0
    %210 = vmatpush2.msra.mxu0 0.0
    %211 = vmatprep.subr.mxu0 0.0
    %212 = vmatpush2.msra.mxu0 0.0
    %213 = vmatprep.subr.mxu0 0.0
    %214 = vmatpush2.msra.mxu0 0.0
    %215 = vmatprep.mubr.f32.mxu0 0.0
    %216 = vmatmul.mubr.f32.gmra.mxu0 %v146
    %v217 = vpop.f32.mrf.mxu0
    %v218 = vadd.f32 0.0, %v217
    %v219 = vpop.f32.mrf.mxu0
    %220 = vmatprep.mubr.f32.mxu0 0.0
    %221 = vmatmul.mubr.f32.gmra.mxu0 %v149
    %v222 = vpop.f32.mrf.mxu0
    %v223 = vadd.f32 0.0, %v222
    %v224 = vpop.f32.mrf.mxu0
    %225 = vdwg.mxu0
    %226 = vmatprep.subr.mxu0 0.0
    %227 = vmatpush1.msra.mxu0 0.0
    %228 = vmatprep.subr.mxu0 0.0
    %229 = vmatpush1.msra.mxu0 0.0
    %230 = vmatprep.subr.mxu0 0.0
    %231 = vmatpush1.msra.mxu0 0.0
    %232 = vmatprep.subr.mxu0 0.0
    %233 = vmatpush1.msra.mxu0 0.0
    %234 = vmatprep.subr.mxu0 0.0
    %235 = vmatpush1.msra.mxu0 0.0
    %236 = vmatprep.subr.mxu0 0.0
    %237 = vmatpush1.msra.mxu0 0.0
    %238 = vmatprep.subr.mxu0 0.0
    %239 = vmatpush1.msra.mxu0 0.0
    %240 = vmatprep.subr.mxu0 0.0
    %241 = vmatpush1.msra.mxu0 0.0
    %242 = vmatprep.subr.mxu0 0.0
    %243 = vmatpush1.msra.mxu0 0.0
    %244 = vmatprep.subr.mxu0 0.0
    %245 = vmatpush1.msra.mxu0 0.0
    %246 = vmatprep.subr.mxu0 0.0
    %247 = vmatpush1.msra.mxu0 0.0
    %248 = vmatprep.subr.mxu0 0.0
    %249 = vmatpush1.msra.mxu0 0.0
    %250 = vmatprep.subr.mxu0 0.0
    %251 = vmatpush1.msra.mxu0 0.0
    %252 = vmatprep.subr.mxu0 0.0
    %253 = vmatpush1.msra.mxu0 0.0
    %254 = vmatprep.subr.mxu0 0.0
    %255 = vmatpush1.msra.mxu0 %v142
    %256 = vmatprep.subr.mxu0 0.0
    %257 = vmatpush1.msra.mxu0 %v137
    %258 = vmatprep.subr.mxu0 0.0
    %259 = vmatpush2.msra.mxu0 0.0
    %260 = vmatprep.subr.mxu0 0.0
    %261 = vmatpush2.msra.mxu0 0.0
    %262 = vmatprep.subr.mxu0 0.0
    %263 = vmatpush2.msra.mxu0 0.0
    %264 = vmatprep.subr.mxu0 0.0
    %265 = vmatpush2.msra.mxu0 0.0
    %266 = vmatprep.subr.mxu0 0.0
    %267 = vmatpush2.msra.mxu0 0.0
    %268 = vmatprep.subr.mxu0 0.0
    %269 = vmatpush2.msra.mxu0 0.0
    %270 = vmatprep.subr.mxu0 0.0
    %271 = vmatpush2.msra.mxu0 0.0
    %272 = vmatprep.subr.mxu0 0.0
    %273 = vmatpush2.msra.mxu0 0.0
    %274 = vmatprep.subr.mxu0 0.0
    %275 = vmatpush2.msra.mxu0 0.0
    %276 = vmatprep.subr.mxu0 0.0
    %277 = vmatpush2.msra.mxu0 0.0
    %278 = vmatprep.subr.mxu0 0.0
    %279 = vmatpush2.msra.mxu0 0.0
    %280 = vmatprep.subr.mxu0 0.0
    %281 = vmatpush2.msra.mxu0 0.0
    %282 = vmatprep.subr.mxu0 0.0
    %283 = vmatpush2.msra.mxu0 0.0
    %284 = vmatprep.subr.mxu0 0.0
    %285 = vmatpush2.msra.mxu0 0.0
    %286 = vmatprep.subr.mxu0 0.0
    %287 = vmatpush2.msra.mxu0 0.0
    %288 = vmatprep.subr.mxu0 0.0
    %289 = vmatpush2.msra.mxu0 0.0
    %290 = vmatprep.mubr.f32.mxu0 0.0
    %291 = vmatmul.mubr.f32.gmra.mxu0 %v146
    %v292 = vpop.f32.mrf.mxu0
    %v293 = vadd.f32 0.0, %v292
    %v294 = vpop.f32.mrf.mxu0
    %295 = vmatprep.mubr.f32.mxu0 0.0
    %296 = vmatmul.mubr.f32.gmra.mxu0 %v149
    %v297 = vpop.f32.mrf.mxu0
    %v298 = vadd.f32 0.0, %v297
    %v299 = vpop.f32.mrf.mxu0
    %300 = vdwg.mxu0
    %v301 = vld [vmem:[%s3] sm:$0x1]
    %v302 = vadd.f32 %v301, 1.0
    %v303 = vmul.f32 %v302, 0.5
    %v304 = vadd.f32 %v303, 0.0
    %v306 = vsel %vm59, %v304, 0
    %308 = vmatprep.subr.mxu0 0.0
    %309 = vmatpush1.msra.mxu0 0.0
    %310 = vmatprep.subr.mxu0 0.0
    %311 = vmatpush1.msra.mxu0 0.0
    %312 = vmatprep.subr.mxu0 0.0
    %313 = vmatpush1.msra.mxu0 0.0
    %314 = vmatprep.subr.mxu0 0.0
    %315 = vmatpush1.msra.mxu0 0.0
    %316 = vmatprep.subr.mxu0 0.0
    %317 = vmatpush1.msra.mxu0 0.0
    %318 = vmatprep.subr.mxu0 0.0
    %319 = vmatpush1.msra.mxu0 0.0
    %320 = vmatprep.subr.mxu0 0.0
    %321 = vmatpush1.msra.mxu0 0.0
    %322 = vmatprep.subr.mxu0 0.0
    %323 = vmatpush1.msra.mxu0 0.0
    %324 = vmatprep.subr.mxu0 0.0
    %325 = vmatpush1.msra.mxu0 0.0
    %326 = vmatprep.subr.mxu0 0.0
    %327 = vmatpush1.msra.mxu0 0.0
    %328 = vmatprep.subr.mxu0 0.0
    %329 = vmatpush1.msra.mxu0 0.0
    %330 = vmatprep.subr.mxu0 0.0
    %331 = vmatpush1.msra.mxu0 0.0
    %332 = vmatprep.subr.mxu0 0.0
    %333 = vmatpush1.msra.mxu0 0.0
    %334 = vmatprep.subr.mxu0 0.0
    %335 = vmatpush1.msra.mxu0 0.0
    %336 = vmatprep.subr.mxu0 0.0
    %337 = vmatpush1.msra.mxu0 %v63
    %338 = vmatprep.subr.mxu0 0.0
    %339 = vmatpush1.msra.mxu0 %v62
    %340 = vmatprep.subr.mxu0 0.0
    %341 = vmatpush2.msra.mxu0 0.0
    %342 = vmatprep.subr.mxu0 0.0
    %343 = vmatpush2.msra.mxu0 0.0
    %344 = vmatprep.subr.mxu0 0.0
    %345 = vmatpush2.msra.mxu0 0.0
    %346 = vmatprep.subr.mxu0 0.0
    %347 = vmatpush2.msra.mxu0 0.0
    %348 = vmatprep.subr.mxu0 0.0
    %349 = vmatpush2.msra.mxu0 0.0
    %350 = vmatprep.subr.mxu0 0.0
    %351 = vmatpush2.msra.mxu0 0.0
    %352 = vmatprep.subr.mxu0 0.0
    %353 = vmatpush2.msra.mxu0 0.0
    %354 = vmatprep.subr.mxu0 0.0
    %355 = vmatpush2.msra.mxu0 0.0
    %356 = vmatprep.subr.mxu0 0.0
    %357 = vmatpush2.msra.mxu0 0.0
    %358 = vmatprep.subr.mxu0 0.0
    %359 = vmatpush2.msra.mxu0 0.0
    %360 = vmatprep.subr.mxu0 0.0
    %361 = vmatpush2.msra.mxu0 0.0
    %362 = vmatprep.subr.mxu0 0.0
    %363 = vmatpush2.msra.mxu0 0.0
    %364 = vmatprep.subr.mxu0 0.0
    %365 = vmatpush2.msra.mxu0 0.0
    %366 = vmatprep.subr.mxu0 0.0
    %367 = vmatpush2.msra.mxu0 0.0
    %368 = vmatprep.subr.mxu0 0.0
    %369 = vmatpush2.msra.mxu0 0.0
    %370 = vmatprep.subr.mxu0 0.0
    %371 = vmatpush2.msra.mxu0 0.0
    %372 = vmatprep.mubr.f32.mxu0 0.0
    %373 = vmatmul.mubr.f32.gmra.mxu0 %v306
    %v374 = vpop.f32.mrf.mxu0
    %v375 = vadd.f32 0.0, %v374
    %v376 = vpop.f32.mrf.mxu0
    %377 = vdwg.mxu0
    %378 = vmatprep.subr.mxu0 0.0
    %379 = vmatpush1.msra.mxu0 0.0
    %380 = vmatprep.subr.mxu0 0.0
    %381 = vmatpush1.msra.mxu0 0.0
    %382 = vmatprep.subr.mxu0 0.0
    %383 = vmatpush1.msra.mxu0 0.0
    %384 = vmatprep.subr.mxu0 0.0
    %385 = vmatpush1.msra.mxu0 0.0
    %386 = vmatprep.subr.mxu0 0.0
    %387 = vmatpush1.msra.mxu0 0.0
    %388 = vmatprep.subr.mxu0 0.0
    %389 = vmatpush1.msra.mxu0 0.0
    %390 = vmatprep.subr.mxu0 0.0
    %391 = vmatpush1.msra.mxu0 0.0
    %392 = vmatprep.subr.mxu0 0.0
    %393 = vmatpush1.msra.mxu0 0.0
    %394 = vmatprep.subr.mxu0 0.0
    %395 = vmatpush1.msra.mxu0 0.0
    %396 = vmatprep.subr.mxu0 0.0
    %397 = vmatpush1.msra.mxu0 0.0
    %398 = vmatprep.subr.mxu0 0.0
    %399 = vmatpush1.msra.mxu0 0.0
    %400 = vmatprep.subr.mxu0 0.0
    %401 = vmatpush1.msra.mxu0 0.0
    %402 = vmatprep.subr.mxu0 0.0
    %403 = vmatpush1.msra.mxu0 0.0
    %404 = vmatprep.subr.mxu0 0.0
    %405 = vmatpush1.msra.mxu0 0.0
    %406 = vmatprep.subr.mxu0 0.0
    %407 = vmatpush1.msra.mxu0 %v142
    %408 = vmatprep.subr.mxu0 0.0
    %409 = vmatpush1.msra.mxu0 %v137
    %410 = vmatprep.subr.mxu0 0.0
    %411 = vmatpush2.msra.mxu0 0.0
    %412 = vmatprep.subr.mxu0 0.0
    %413 = vmatpush2.msra.mxu0 0.0
    %414 = vmatprep.subr.mxu0 0.0
    %415 = vmatpush2.msra.mxu0 0.0
    %416 = vmatprep.subr.mxu0 0.0
    %417 = vmatpush2.msra.mxu0 0.0
    %418 = vmatprep.subr.mxu0 0.0
    %419 = vmatpush2.msra.mxu0 0.0
    %420 = vmatprep.subr.mxu0 0.0
    %421 = vmatpush2.msra.mxu0 0.0
    %422 = vmatprep.subr.mxu0 0.0
    %423 = vmatpush2.msra.mxu0 0.0
    %424 = vmatprep.subr.mxu0 0.0
    %425 = vmatpush2.msra.mxu0 0.0
    %426 = vmatprep.subr.mxu0 0.0
    %427 = vmatpush2.msra.mxu0 0.0
    %428 = vmatprep.subr.mxu0 0.0
    %429 = vmatpush2.msra.mxu0 0.0
    %430 = vmatprep.subr.mxu0 0.0
    %431 = vmatpush2.msra.mxu0 0.0
    %432 = vmatprep.subr.mxu0 0.0
    %433 = vmatpush2.msra.mxu0 0.0
    %434 = vmatprep.subr.mxu0 0.0
    %435 = vmatpush2.msra.mxu0 0.0
    %436 = vmatprep.subr.mxu0 0.0
    %437 = vmatpush2.msra.mxu0 0.0
    %438 = vmatprep.subr.mxu0 0.0
    %439 = vmatpush2.msra.mxu0 0.0
    %440 = vmatprep.subr.mxu0 0.0
    %441 = vmatpush2.msra.mxu0 0.0
    %442 = vmatprep.mubr.f32.mxu0 0.0
    %443 = vmatmul.mubr.f32.gmra.mxu0 %v306
    %v444 = vpop.f32.mrf.mxu0
    %v445 = vadd.f32 0.0, %v444
    %v446 = vpop.f32.mrf.mxu0
    %447 = vdwg.mxu0
    %448 = vmatprep.subr.mxu0 0.0
    %449 = vmatpush1.msra.mxu0 0.0
    %450 = vmatprep.subr.mxu0 0.0
    %451 = vmatpush1.msra.mxu0 0.0
    %452 = vmatprep.subr.mxu0 0.0
    %453 = vmatpush1.msra.mxu0 0.0
    %454 = vmatprep.subr.mxu0 0.0
    %455 = vmatpush1.msra.mxu0 0.0
    %456 = vmatprep.subr.mxu0 0.0
    %457 = vmatpush1.msra.mxu0 0.0
    %458 = vmatprep.subr.mxu0 0.0
    %459 = vmatpush1.msra.mxu0 0.0
    %460 = vmatprep.subr.mxu0 0.0
    %461 = vmatpush1.msra.mxu0 0.0
    %462 = vmatprep.subr.mxu0 0.0
    %463 = vmatpush1.msra.mxu0 0.0
    %464 = vmatprep.subr.mxu0 0.0
    %465 = vmatpush1.msra.mxu0 0.0
    %466 = vmatprep.subr.mxu0 0.0
    %467 = vmatpush1.msra.mxu0 0.0
    %468 = vmatprep.subr.mxu0 0.0
    %469 = vmatpush1.msra.mxu0 0.0
    %470 = vmatprep.subr.mxu0 0.0
    %471 = vmatpush1.msra.mxu0 0.0
    %472 = vmatprep.subr.mxu0 0.0
    %473 = vmatpush1.msra.mxu0 0.0
    %474 = vmatprep.subr.mxu0 0.0
    %475 = vmatpush1.msra.mxu0 0.0
    %476 = vmatprep.subr.mxu0 0.0
    %477 = vmatpush1.msra.mxu0 %v223
    %478 = vmatprep.subr.mxu0 0.0
    %479 = vmatpush1.msra.mxu0 %v218
    %480 = vmatprep.subr.mxu0 0.0
    %481 = vmatpush2.msra.mxu0 0.0
    %482 = vmatprep.subr.mxu0 0.0
    %483 = vmatpush2.msra.mxu0 0.0
    %484 = vmatprep.subr.mxu0 0.0
    %485 = vmatpush2.msra.mxu0 0.0
    %486 = vmatprep.subr.mxu0 0.0
    %487 = vmatpush2.msra.mxu0 0.0
    %488 = vmatprep.subr.mxu0 0.0
    %489 = vmatpush2.msra.mxu0 0.0
    %490 = vmatprep.subr.mxu0 0.0
    %491 = vmatpush2.msra.mxu0 0.0
    %492 = vmatprep.subr.mxu0 0.0
    %493 = vmatpush2.msra.mxu0 0.0
    %494 = vmatprep.subr.mxu0 0.0
    %495 = vmatpush2.msra.mxu0 0.0
    %496 = vmatprep.subr.mxu0 0.0
    %497 = vmatpush2.msra.mxu0 0.0
    %498 = vmatprep.subr.mxu0 0.0
    %499 = vmatpush2.msra.mxu0 0.0
    %500 = vmatprep.subr.mxu0 0.0
    %501 = vmatpush2.msra.mxu0 0.0
    %502 = vmatprep.subr.mxu0 0.0
    %503 = vmatpush2.msra.mxu0 0.0
    %504 = vmatprep.subr.mxu0 0.0
    %505 = vmatpush2.msra.mxu0 0.0
    %506 = vmatprep.subr.mxu0 0.0
    %507 = vmatpush2.msra.mxu0 0.0
    %508 = vmatprep.subr.mxu0 0.0
    %509 = vmatpush2.msra.mxu0 0.0
    %510 = vmatprep.subr.mxu0 0.0
    %511 = vmatpush2.msra.mxu0 0.0
    %512 = vmatprep.mubr.f32.mxu0 0.0
    %513 = vmatmul.mubr.f32.gmra.mxu0 %v306
    %v514 = vpop.f32.mrf.mxu0
    %v515 = vadd.f32 0.0, %v514
    %v516 = vpop.f32.mrf.mxu0
    %517 = vdwg.mxu0
    %518 = vmatprep.subr.mxu0 0.0
    %519 = vmatpush1.msra.mxu0 0.0
    %520 = vmatprep.subr.mxu0 0.0
    %521 = vmatpush1.msra.mxu0 0.0
    %522 = vmatprep.subr.mxu0 0.0
    %523 = vmatpush1.msra.mxu0 0.0
    %524 = vmatprep.subr.mxu0 0.0
    %525 = vmatpush1.msra.mxu0 0.0
    %526 = vmatprep.subr.mxu0 0.0
    %527 = vmatpush1.msra.mxu0 0.0
    %528 = vmatprep.subr.mxu0 0.0
    %529 = vmatpush1.msra.mxu0 0.0
    %530 = vmatprep.subr.mxu0 0.0
    %531 = vmatpush1.msra.mxu0 0.0
    %532 = vmatprep.subr.mxu0 0.0
    %533 = vmatpush1.msra.mxu0 0.0
    %534 = vmatprep.subr.mxu0 0.0
    %535 = vmatpush1.msra.mxu0 0.0
    %536 = vmatprep.subr.mxu0 0.0
    %537 = vmatpush1.msra.mxu0 0.0
    %538 = vmatprep.subr.mxu0 0.0
    %539 = vmatpush1.msra.mxu0 0.0
    %540 = vmatprep.subr.mxu0 0.0
    %541 = vmatpush1.msra.mxu0 0.0
    %542 = vmatprep.subr.mxu0 0.0
    %543 = vmatpush1.msra.mxu0 0.0
    %544 = vmatprep.subr.mxu0 0.0
    %545 = vmatpush1.msra.mxu0 0.0
    %546 = vmatprep.subr.mxu0 0.0
    %547 = vmatpush1.msra.mxu0 %v298
    %548 = vmatprep.subr.mxu0 0.0
    %549 = vmatpush1.msra.mxu0 %v293
    %550 = vmatprep.subr.mxu0 0.0
    %551 = vmatpush2.msra.mxu0 0.0
    %552 = vmatprep.subr.mxu0 0.0
    %553 = vmatpush2.msra.mxu0 0.0
    %554 = vmatprep.subr.mxu0 0.0
    %555 = vmatpush2.msra.mxu0 0.0
    %556 = vmatprep.subr.mxu0 0.0
    %557 = vmatpush2.msra.mxu0 0.0
    %558 = vmatprep.subr.mxu0 0.0
    %559 = vmatpush2.msra.mxu0 0.0
    %560 = vmatprep.subr.mxu0 0.0
    %561 = vmatpush2.msra.mxu0 0.0
    %562 = vmatprep.subr.mxu0 0.0
    %563 = vmatpush2.msra.mxu0 0.0
    %564 = vmatprep.subr.mxu0 0.0
    %565 = vmatpush2.msra.mxu0 0.0
    %566 = vmatprep.subr.mxu0 0.0
    %567 = vmatpush2.msra.mxu0 0.0
    %568 = vmatprep.subr.mxu0 0.0
    %569 = vmatpush2.msra.mxu0 0.0
    %570 = vmatprep.subr.mxu0 0.0
    %571 = vmatpush2.msra.mxu0 0.0
    %572 = vmatprep.subr.mxu0 0.0
    %573 = vmatpush2.msra.mxu0 0.0
    %574 = vmatprep.subr.mxu0 0.0
    %575 = vmatpush2.msra.mxu0 0.0
    %576 = vmatprep.subr.mxu0 0.0
    %577 = vmatpush2.msra.mxu0 0.0
    %578 = vmatprep.subr.mxu0 0.0
    %579 = vmatpush2.msra.mxu0 0.0
    %580 = vmatprep.subr.mxu0 0.0
    %581 = vmatpush2.msra.mxu0 0.0
    %582 = vmatprep.mubr.f32.mxu0 0.0
    %583 = vmatmul.mubr.f32.gmra.mxu0 %v306
    %v584 = vpop.f32.mrf.mxu0
    %v585 = vadd.f32 0.0, %v584
    %v586 = vpop.f32.mrf.mxu0
    %587 = vdwg.mxu0
    %s588 = sld [smem:[#allocation2]]
    %v589 = vstv %s588
    %v590 = vmul.f32 %v589, %v304
    %s591 = sld [smem:[#allocation2 + $0x1]]
    %v592 = vstv %s591
    %v593 = vmul.f32 %v592, %v375
    %v594 = vadd.f32 %v590, %v593
    %s595 = sld [smem:[#allocation2 + $0x2]]
    %v596 = vstv %s595
    %v597 = vmul.f32 %v596, %v445
    %v598 = vadd.f32 %v594, %v597
    %s599 = sld [smem:[#allocation2 + $0x3]]
    %v600 = vstv %s599
    %v601 = vmul.f32 %v600, %v515
    %v602 = vadd.f32 %v598, %v601
    %s603 = sld [smem:[#allocation2 + $0x4]]
    %v604 = vstv %s603
    %v605 = vmul.f32 %v604, %v585
    %v606 = vadd.f32 %v602, %v605
    %v607 = vmax.f32 %v606, 0.0
    %vm608 = vcmask 122880
    %v609 = vsel %vm608, %v607, 0.0
    %610 = vadd.xlane.f32.xlu0 %v609
    %v611 = vpop.xlane.xlu0 %610
    %v612 = vrcp.pop 16.0
    %v613 = vmul.f32 %v611, %v612
    %v614 = vrcp.pop %v613
    %v615 = vmul.f32 %v607, %v614
    %v617 = vsel %vm59, %v615, 0
    %619 = vmatprep.subr.mxu0 0.0
    %620 = vmatpush1.msra.mxu0 0.0
    %621 = vmatprep.subr.mxu0 0.0
    %622 = vmatpush1.msra.mxu0 0.0
    %623 = vmatprep.subr.mxu0 0.0
    %624 = vmatpush1.msra.mxu0 0.0
    %625 = vmatprep.subr.mxu0 0.0
    %626 = vmatpush1.msra.mxu0 0.0
    %627 = vmatprep.subr.mxu0 0.0
    %628 = vmatpush1.msra.mxu0 0.0
    %629 = vmatprep.subr.mxu0 0.0
    %630 = vmatpush1.msra.mxu0 0.0
    %631 = vmatprep.subr.mxu0 0.0
    %632 = vmatpush1.msra.mxu0 0.0
    %633 = vmatprep.subr.mxu0 0.0
    %634 = vmatpush1.msra.mxu0 0.0
    %635 = vmatprep.subr.mxu0 0.0
    %636 = vmatpush1.msra.mxu0 0.0
    %637 = vmatprep.subr.mxu0 0.0
    %638 = vmatpush1.msra.mxu0 0.0
    %639 = vmatprep.subr.mxu0 0.0
    %640 = vmatpush1.msra.mxu0 0.0
    %641 = vmatprep.subr.mxu0 0.0
    %642 = vmatpush1.msra.mxu0 0.0
    %643 = vmatprep.subr.mxu0 0.0
    %644 = vmatpush1.msra.mxu0 0.0
    %645 = vmatprep.subr.mxu0 0.0
    %646 = vmatpush1.msra.mxu0 0.0
    %647 = vmatprep.subr.mxu0 0.0
    %648 = vmatpush1.msra.mxu0 %v63
    %649 = vmatprep.subr.mxu0 0.0
    %650 = vmatpush1.msra.mxu0 %v62
    %651 = vmatprep.subr.mxu0 0.0
    %652 = vmatpush2.msra.mxu0 0.0
    %653 = vmatprep.subr.mxu0 0.0
    %654 = vmatpush2.msra.mxu0 0.0
    %655 = vmatprep.subr.mxu0 0.0
    %656 = vmatpush2.msra.mxu0 0.0
    %657 = vmatprep.subr.mxu0 0.0
    %658 = vmatpush2.msra.mxu0 0.0
    %659 = vmatprep.subr.mxu0 0.0
    %660 = vmatpush2.msra.mxu0 0.0
    %661 = vmatprep.subr.mxu0 0.0
    %662 = vmatpush2.msra.mxu0 0.0
    %663 = vmatprep.subr.mxu0 0.0
    %664 = vmatpush2.msra.mxu0 0.0
    %665 = vmatprep.subr.mxu0 0.0
    %666 = vmatpush2.msra.mxu0 0.0
    %667 = vmatprep.subr.mxu0 0.0
    %668 = vmatpush2.msra.mxu0 0.0
    %669 = vmatprep.subr.mxu0 0.0
    %670 = vmatpush2.msra.mxu0 0.0
    %671 = vmatprep.subr.mxu0 0.0
    %672 = vmatpush2.msra.mxu0 0.0
    %673 = vmatprep.subr.mxu0 0.0
    %674 = vmatpush2.msra.mxu0 0.0
    %675 = vmatprep.subr.mxu0 0.0
    %676 = vmatpush2.msra.mxu0 0.0
    %677 = vmatprep.subr.mxu0 0.0
    %678 = vmatpush2.msra.mxu0 0.0
    %679 = vmatprep.subr.mxu0 0.0
    %680 = vmatpush2.msra.mxu0 0.0
    %681 = vmatprep.subr.mxu0 0.0
    %682 = vmatpush2.msra.mxu0 0.0
    %683 = vmatprep.mubr.f32.mxu0 0.0
    %684 = vmatmul.mubr.f32.gmra.mxu0 %v617
    %v685 = vpop.f32.mrf.mxu0
    %v686 = vadd.f32 0.0, %v685
    %v687 = vpop.f32.mrf.mxu0
    %688 = vdwg.mxu0
    %689 = vmatprep.subr.mxu0 0.0
    %690 = vmatpush1.msra.mxu0 0.0
    %691 = vmatprep.subr.mxu0 0.0
    %692 = vmatpush1.msra.mxu0 0.0
    %693 = vmatprep.subr.mxu0 0.0
    %694 = vmatpush1.msra.mxu0 0.0
    %695 = vmatprep.subr.mxu0 0.0
    %696 = vmatpush1.msra.mxu0 0.0
    %697 = vmatprep.subr.mxu0 0.0
    %698 = vmatpush1.msra.mxu0 0.0
    %699 = vmatprep.subr.mxu0 0.0
    %700 = vmatpush1.msra.mxu0 0.0
    %701 = vmatprep.subr.mxu0 0.0
    %702 = vmatpush1.msra.mxu0 0.0
    %703 = vmatprep.subr.mxu0 0.0
    %704 = vmatpush1.msra.mxu0 0.0
    %705 = vmatprep.subr.mxu0 0.0
    %706 = vmatpush1.msra.mxu0 0.0
    %707 = vmatprep.subr.mxu0 0.0
    %708 = vmatpush1.msra.mxu0 0.0
    %709 = vmatprep.subr.mxu0 0.0
    %710 = vmatpush1.msra.mxu0 0.0
    %711 = vmatprep.subr.mxu0 0.0
    %712 = vmatpush1.msra.mxu0 0.0
    %713 = vmatprep.subr.mxu0 0.0
    %714 = vmatpush1.msra.mxu0 0.0
    %715 = vmatprep.subr.mxu0 0.0
    %716 = vmatpush1.msra.mxu0 0.0
    %717 = vmatprep.subr.mxu0 0.0
    %718 = vmatpush1.msra.mxu0 %v142
    %719 = vmatprep.subr.mxu0 0.0
    %720 = vmatpush1.msra.mxu0 %v137
    %721 = vmatprep.subr.mxu0 0.0
    %722 = vmatpush2.msra.mxu0 0.0
    %723 = vmatprep.subr.mxu0 0.0
    %724 = vmatpush2.msra.mxu0 0.0
    %725 = vmatprep.subr.mxu0 0.0
    %726 = vmatpush2.msra.mxu0 0.0
    %727 = vmatprep.subr.mxu0 0.0
    %728 = vmatpush2.msra.mxu0 0.0
    %729 = vmatprep.subr.mxu0 0.0
    %730 = vmatpush2.msra.mxu0 0.0
    %731 = vmatprep.subr.mxu0 0.0
    %732 = vmatpush2.msra.mxu0 0.0
    %733 = vmatprep.subr.mxu0 0.0
    %734 = vmatpush2.msra.mxu0 0.0
    %735 = vmatprep.subr.mxu0 0.0
    %736 = vmatpush2.msra.mxu0 0.0
    %737 = vmatprep.subr.mxu0 0.0
    %738 = vmatpush2.msra.mxu0 0.0
    %739 = vmatprep.subr.mxu0 0.0
    %740 = vmatpush2.msra.mxu0 0.0
    %741 = vmatprep.subr.mxu0 0.0
    %742 = vmatpush2.msra.mxu0 0.0
    %743 = vmatprep.subr.mxu0 0.0
    %744 = vmatpush2.msra.mxu0 0.0
    %745 = vmatprep.subr.mxu0 0.0
    %746 = vmatpush2.msra.mxu0 0.0
    %747 = vmatprep.subr.mxu0 0.0
    %748 = vmatpush2.msra.mxu0 0.0
    %749 = vmatprep.subr.mxu0 0.0
    %750 = vmatpush2.msra.mxu0 0.0
    %751 = vmatprep.subr.mxu0 0.0
    %752 = vmatpush2.msra.mxu0 0.0
    %753 = vmatprep.mubr.f32.mxu0 0.0
    %754 = vmatmul.mubr.f32.gmra.mxu0 %v617
    %v755 = vpop.f32.mrf.mxu0
    %v756 = vadd.f32 0.0, %v755
    %v757 = vpop.f32.mrf.mxu0
    %758 = vdwg.mxu0
    %759 = vmatprep.subr.mxu0 0.0
    %760 = vmatpush1.msra.mxu0 0.0
    %761 = vmatprep.subr.mxu0 0.0
    %762 = vmatpush1.msra.mxu0 0.0
    %763 = vmatprep.subr.mxu0 0.0
    %764 = vmatpush1.msra.mxu0 0.0
    %765 = vmatprep.subr.mxu0 0.0
    %766 = vmatpush1.msra.mxu0 0.0
    %767 = vmatprep.subr.mxu0 0.0
    %768 = vmatpush1.msra.mxu0 0.0
    %769 = vmatprep.subr.mxu0 0.0
    %770 = vmatpush1.msra.mxu0 0.0
    %771 = vmatprep.subr.mxu0 0.0
    %772 = vmatpush1.msra.mxu0 0.0
    %773 = vmatprep.subr.mxu0 0.0
    %774 = vmatpush1.msra.mxu0 0.0
    %775 = vmatprep.subr.mxu0 0.0
    %776 = vmatpush1.msra.mxu0 0.0
    %777 = vmatprep.subr.mxu0 0.0
    %778 = vmatpush1.msra.mxu0 0.0
    %779 = vmatprep.subr.mxu0 0.0
    %780 = vmatpush1.msra.mxu0 0.0
    %781 = vmatprep.subr.mxu0 0.0
    %782 = vmatpush1.msra.mxu0 0.0
    %783 = vmatprep.subr.mxu0 0.0
    %784 = vmatpush1.msra.mxu0 0.0
    %785 = vmatprep.subr.mxu0 0.0
    %786 = vmatpush1.msra.mxu0 0.0
    %787 = vmatprep.subr.mxu0 0.0
    %788 = vmatpush1.msra.mxu0 %v223
    %789 = vmatprep.subr.mxu0 0.0
    %790 = vmatpush1.msra.mxu0 %v218
    %791 = vmatprep.subr.mxu0 0.0
    %792 = vmatpush2.msra.mxu0 0.0
    %793 = vmatprep.subr.mxu0 0.0
    %794 = vmatpush2.msra.mxu0 0.0
    %795 = vmatprep.subr.mxu0 0.0
    %796 = vmatpush2.msra.mxu0 0.0
    %797 = vmatprep.subr.mxu0 0.0
    %798 = vmatpush2.msra.mxu0 0.0
    %799 = vmatprep.subr.mxu0 0.0
    %800 = vmatpush2.msra.mxu0 0.0
    %801 = vmatprep.subr.mxu0 0.0
    %802 = vmatpush2.msra.mxu0 0.0
    %803 = vmatprep.subr.mxu0 0.0
    %804 = vmatpush2.msra.mxu0 0.0
    %805 = vmatprep.subr.mxu0 0.0
    %806 = vmatpush2.msra.mxu0 0.0
    %807 = vmatprep.subr.mxu0 0.0
    %808 = vmatpush2.msra.mxu0 0.0
    %809 = vmatprep.subr.mxu0 0.0
    %810 = vmatpush2.msra.mxu0 0.0
    %811 = vmatprep.subr.mxu0 0.0
    %812 = vmatpush2.msra.mxu0 0.0
    %813 = vmatprep.subr.mxu0 0.0
    %814 = vmatpush2.msra.mxu0 0.0
    %815 = vmatprep.subr.mxu0 0.0
    %816 = vmatpush2.msra.mxu0 0.0
    %817 = vmatprep.subr.mxu0 0.0
    %818 = vmatpush2.msra.mxu0 0.0
    %819 = vmatprep.subr.mxu0 0.0
    %820 = vmatpush2.msra.mxu0 0.0
    %821 = vmatprep.subr.mxu0 0.0
    %822 = vmatpush2.msra.mxu0 0.0
    %823 = vmatprep.mubr.f32.mxu0 0.0
    %824 = vmatmul.mubr.f32.gmra.mxu0 %v617
    %v825 = vpop.f32.mrf.mxu0
    %v826 = vadd.f32 0.0, %v825
    %v827 = vpop.f32.mrf.mxu0
    %828 = vdwg.mxu0
    %829 = vmatprep.subr.mxu0 0.0
    %830 = vmatpush1.msra.mxu0 0.0
    %831 = vmatprep.subr.mxu0 0.0
    %832 = vmatpush1.msra.mxu0 0.0
    %833 = vmatprep.subr.mxu0 0.0
    %834 = vmatpush1.msra.mxu0 0.0
    %835 = vmatprep.subr.mxu0 0.0
    %836 = vmatpush1.msra.mxu0 0.0
    %837 = vmatprep.subr.mxu0 0.0
    %838 = vmatpush1.msra.mxu0 0.0
    %839 = vmatprep.subr.mxu0 0.0
    %840 = vmatpush1.msra.mxu0 0.0
    %841 = vmatprep.subr.mxu0 0.0
    %842 = vmatpush1.msra.mxu0 0.0
    %843 = vmatprep.subr.mxu0 0.0
    %844 = vmatpush1.msra.mxu0 0.0
    %845 = vmatprep.subr.mxu0 0.0
    %846 = vmatpush1.msra.mxu0 0.0
    %847 = vmatprep.subr.mxu0 0.0
    %848 = vmatpush1.msra.mxu0 0.0
    %849 = vmatprep.subr.mxu0 0.0
    %850 = vmatpush1.msra.mxu0 0.0
    %851 = vmatprep.subr.mxu0 0.0
    %852 = vmatpush1.msra.mxu0 0.0
    %853 = vmatprep.subr.mxu0 0.0
    %854 = vmatpush1.msra.mxu0 0.0
    %855 = vmatprep.subr.mxu0 0.0
    %856 = vmatpush1.msra.mxu0 0.0
    %857 = vmatprep.subr.mxu0 0.0
    %858 = vmatpush1.msra.mxu0 %v298
    %859 = vmatprep.subr.mxu0 0.0
    %860 = vmatpush1.msra.mxu0 %v293
    %861 = vmatprep.subr.mxu0 0.0
    %862 = vmatpush2.msra.mxu0 0.0
    %863 = vmatprep.subr.mxu0 0.0
    %864 = vmatpush2.msra.mxu0 0.0
    %865 = vmatprep.subr.mxu0 0.0
    %866 = vmatpush2.msra.mxu0 0.0
    %867 = vmatprep.subr.mxu0 0.0
    %868 = vmatpush2.msra.mxu0 0.0
    %869 = vmatprep.subr.mxu0 0.0
    %870 = vmatpush2.msra.mxu0 0.0
    %871 = vmatprep.subr.mxu0 0.0
    %872 = vmatpush2.msra.mxu0 0.0
    %873 = vmatprep.subr.mxu0 0.0
    %874 = vmatpush2.msra.mxu0 0.0
    %875 = vmatprep.subr.mxu0 0.0
    %876 = vmatpush2.msra.mxu0 0.0
    %877 = vmatprep.subr.mxu0 0.0
    %878 = vmatpush2.msra.mxu0 0.0
    %879 = vmatprep.subr.mxu0 0.0
    %880 = vmatpush2.msra.mxu0 0.0
    %881 = vmatprep.subr.mxu0 0.0
    %882 = vmatpush2.msra.mxu0 0.0
    %883 = vmatprep.subr.mxu0 0.0
    %884 = vmatpush2.msra.mxu0 0.0
    %885 = vmatprep.subr.mxu0 0.0
    %886 = vmatpush2.msra.mxu0 0.0
    %887 = vmatprep.subr.mxu0 0.0
    %888 = vmatpush2.msra.mxu0 0.0
    %889 = vmatprep.subr.mxu0 0.0
    %890 = vmatpush2.msra.mxu0 0.0
    %891 = vmatprep.subr.mxu0 0.0
    %892 = vmatpush2.msra.mxu0 0.0
    %893 = vmatprep.mubr.f32.mxu0 0.0
    %894 = vmatmul.mubr.f32.gmra.mxu0 %v617
    %v895 = vpop.f32.mrf.mxu0
    %v896 = vadd.f32 0.0, %v895
    %v897 = vpop.f32.mrf.mxu0
    %898 = vdwg.mxu0
    %s899 = sld [smem:[#allocation2 + $0x80]]
    %v900 = vstv %s899
    %v901 = vmul.f32 %v900, %v615
    %s902 = sld [smem:[#allocation2 + $0x81]]
    %v903 = vstv %s902
    %v904 = vmul.f32 %v903, %v686
    %v905 = vadd.f32 %v901, %v904
    %s906 = sld [smem:[#allocation2 + $0x82]]
    %v907 = vstv %s906
    %v908 = vmul.f32 %v907, %v756
    %v909 = vadd.f32 %v905, %v908
    %s910 = sld [smem:[#allocation2 + $0x83]]
    %v911 = vstv %s910
    %v912 = vmul.f32 %v911, %v826
    %v913 = vadd.f32 %v909, %v912
    %s914 = sld [smem:[#allocation2 + $0x84]]
    %v915 = vstv %s914
    %v916 = vmul.f32 %v915, %v896
    %v917 = vadd.f32 %v913, %v916
    %v918 = vmax.f32 %v917, 0.0
    %v919 = vsel %vm608, %v918, 0.0
    %920 = vadd.xlane.f32.xlu0 %v919
    %v921 = vpop.xlane.xlu0 %920
    %v922 = vmul.f32 %v921, %v612
    %v923 = vrcp.pop %v922
    %v924 = vmul.f32 %v918, %v923
    %v926 = vsel %vm59, %v924, 0
    %928 = vmatprep.subr.mxu0 0.0
    %929 = vmatpush1.msra.mxu0 0.0
    %930 = vmatprep.subr.mxu0 0.0
    %931 = vmatpush1.msra.mxu0 0.0
    %932 = vmatprep.subr.mxu0 0.0
    %933 = vmatpush1.msra.mxu0 0.0
    %934 = vmatprep.subr.mxu0 0.0
    %935 = vmatpush1.msra.mxu0 0.0
    %936 = vmatprep.subr.mxu0 0.0
    %937 = vmatpush1.msra.mxu0 0.0
    %938 = vmatprep.subr.mxu0 0.0
    %939 = vmatpush1.msra.mxu0 0.0
    %940 = vmatprep.subr.mxu0 0.0
    %941 = vmatpush1.msra.mxu0 0.0
    %942 = vmatprep.subr.mxu0 0.0
    %943 = vmatpush1.msra.mxu0 0.0
    %944 = vmatprep.subr.mxu0 0.0
    %945 = vmatpush1.msra.mxu0 0.0
    %946 = vmatprep.subr.mxu0 0.0
    %947 = vmatpush1.msra.mxu0 0.0
    %948 = vmatprep.subr.mxu0 0.0
    %949 = vmatpush1.msra.mxu0 0.0
    %950 = vmatprep.subr.mxu0 0.0
    %951 = vmatpush1.msra.mxu0 0.0
    %952 = vmatprep.subr.mxu0 0.0
    %953 = vmatpush1.msra.mxu0 0.0
    %954 = vmatprep.subr.mxu0 0.0
    %955 = vmatpush1.msra.mxu0 0.0
    %956 = vmatprep.subr.mxu0 0.0
    %957 = vmatpush1.msra.mxu0 %v63
    %958 = vmatprep.subr.mxu0 0.0
    %959 = vmatpush1.msra.mxu0 %v62
    %960 = vmatprep.subr.mxu0 0.0
    %961 = vmatpush2.msra.mxu0 0.0
    %962 = vmatprep.subr.mxu0 0.0
    %963 = vmatpush2.msra.mxu0 0.0
    %964 = vmatprep.subr.mxu0 0.0
    %965 = vmatpush2.msra.mxu0 0.0
    %966 = vmatprep.subr.mxu0 0.0
    %967 = vmatpush2.msra.mxu0 0.0
    %968 = vmatprep.subr.mxu0 0.0
    %969 = vmatpush2.msra.mxu0 0.0
    %970 = vmatprep.subr.mxu0 0.0
    %971 = vmatpush2.msra.mxu0 0.0
    %972 = vmatprep.subr.mxu0 0.0
    %973 = vmatpush2.msra.mxu0 0.0
    %974 = vmatprep.subr.mxu0 0.0
    %975 = vmatpush2.msra.mxu0 0.0
    %976 = vmatprep.subr.mxu0 0.0
    %977 = vmatpush2.msra.mxu0 0.0
    %978 = vmatprep.subr.mxu0 0.0
    %979 = vmatpush2.msra.mxu0 0.0
    %980 = vmatprep.subr.mxu0 0.0
    %981 = vmatpush2.msra.mxu0 0.0
    %982 = vmatprep.subr.mxu0 0.0
    %983 = vmatpush2.msra.mxu0 0.0
    %984 = vmatprep.subr.mxu0 0.0
    %985 = vmatpush2.msra.mxu0 0.0
    %986 = vmatprep.subr.mxu0 0.0
    %987 = vmatpush2.msra.mxu0 0.0
    %988 = vmatprep.subr.mxu0 0.0
    %989 = vmatpush2.msra.mxu0 0.0
    %990 = vmatprep.subr.mxu0 0.0
    %991 = vmatpush2.msra.mxu0 0.0
    %992 = vmatprep.mubr.f32.mxu0 0.0
    %993 = vmatmul.mubr.f32.gmra.mxu0 %v926
    %v994 = vpop.f32.mrf.mxu0
    %v995 = vadd.f32 0.0, %v994
    %v996 = vpop.f32.mrf.mxu0
    %997 = vdwg.mxu0
    %998 = vmatprep.subr.mxu0 0.0
    %999 = vmatpush1.msra.mxu0 0.0
    %1000 = vmatprep.subr.mxu0 0.0
    %1001 = vmatpush1.msra.mxu0 0.0
    %1002 = vmatprep.subr.mxu0 0.0
    %1003 = vmatpush1.msra.mxu0 0.0
    %1004 = vmatprep.subr.mxu0 0.0
    %1005 = vmatpush1.msra.mxu0 0.0
    %1006 = vmatprep.subr.mxu0 0.0
    %1007 = vmatpush1.msra.mxu0 0.0
    %1008 = vmatprep.subr.mxu0 0.0
    %1009 = vmatpush1.msra.mxu0 0.0
    %1010 = vmatprep.subr.mxu0 0.0
    %1011 = vmatpush1.msra.mxu0 0.0
    %1012 = vmatprep.subr.mxu0 0.0
    %1013 = vmatpush1.msra.mxu0 0.0
    %1014 = vmatprep.subr.mxu0 0.0
    %1015 = vmatpush1.msra.mxu0 0.0
    %1016 = vmatprep.subr.mxu0 0.0
    %1017 = vmatpush1.msra.mxu0 0.0
    %1018 = vmatprep.subr.mxu0 0.0
    %1019 = vmatpush1.msra.mxu0 0.0
    %1020 = vmatprep.subr.mxu0 0.0
    %1021 = vmatpush1.msra.mxu0 0.0
    %1022 = vmatprep.subr.mxu0 0.0
    %1023 = vmatpush1.msra.mxu0 0.0
    %1024 = vmatprep.subr.mxu0 0.0
    %1025 = vmatpush1.msra.mxu0 0.0
    %1026 = vmatprep.subr.mxu0 0.0
    %1027 = vmatpush1.msra.mxu0 %v142
    %1028 = vmatprep.subr.mxu0 0.0
    %1029 = vmatpush1.msra.mxu0 %v137
    %1030 = vmatprep.subr.mxu0 0.0
    %1031 = vmatpush2.msra.mxu0 0.0
    %1032 = vmatprep.subr.mxu0 0.0
    %1033 = vmatpush2.msra.mxu0 0.0
    %1034 = vmatprep.subr.mxu0 0.0
    %1035 = vmatpush2.msra.mxu0 0.0
    %1036 = vmatprep.subr.mxu0 0.0
    %1037 = vmatpush2.msra.mxu0 0.0
    %1038 = vmatprep.subr.mxu0 0.0
    %1039 = vmatpush2.msra.mxu0 0.0
    %1040 = vmatprep.subr.mxu0 0.0
    %1041 = vmatpush2.msra.mxu0 0.0
    %1042 = vmatprep.subr.mxu0 0.0
    %1043 = vmatpush2.msra.mxu0 0.0
    %1044 = vmatprep.subr.mxu0 0.0
    %1045 = vmatpush2.msra.mxu0 0.0
    %1046 = vmatprep.subr.mxu0 0.0
    %1047 = vmatpush2.msra.mxu0 0.0
    %1048 = vmatprep.subr.mxu0 0.0
    %1049 = vmatpush2.msra.mxu0 0.0
    %1050 = vmatprep.subr.mxu0 0.0
    %1051 = vmatpush2.msra.mxu0 0.0
    %1052 = vmatprep.subr.mxu0 0.0
    %1053 = vmatpush2.msra.mxu0 0.0
    %1054 = vmatprep.subr.mxu0 0.0
    %1055 = vmatpush2.msra.mxu0 0.0
    %1056 = vmatprep.subr.mxu0 0.0
    %1057 = vmatpush2.msra.mxu0 0.0
    %1058 = vmatprep.subr.mxu0 0.0
    %1059 = vmatpush2.msra.mxu0 0.0
    %1060 = vmatprep.subr.mxu0 0.0
    %1061 = vmatpush2.msra.mxu0 0.0
    %1062 = vmatprep.mubr.f32.mxu0 0.0
    %1063 = vmatmul.mubr.f32.gmra.mxu0 %v926
    %v1064 = vpop.f32.mrf.mxu0
    %v1065 = vadd.f32 0.0, %v1064
    %v1066 = vpop.f32.mrf.mxu0
    %1067 = vdwg.mxu0
    %1068 = vmatprep.subr.mxu0 0.0
    %1069 = vmatpush1.msra.mxu0 0.0
    %1070 = vmatprep.subr.mxu0 0.0
    %1071 = vmatpush1.msra.mxu0 0.0
    %1072 = vmatprep.subr.mxu0 0.0
    %1073 = vmatpush1.msra.mxu0 0.0
    %1074 = vmatprep.subr.mxu0 0.0
    %1075 = vmatpush1.msra.mxu0 0.0
    %1076 = vmatprep.subr.mxu0 0.0
    %1077 = vmatpush1.msra.mxu0 0.0
    %1078 = vmatprep.subr.mxu0 0.0
    %1079 = vmatpush1.msra.mxu0 0.0
    %1080 = vmatprep.subr.mxu0 0.0
    %1081 = vmatpush1.msra.mxu0 0.0
    %1082 = vmatprep.subr.mxu0 0.0
    %1083 = vmatpush1.msra.mxu0 0.0
    %1084 = vmatprep.subr.mxu0 0.0
    %1085 = vmatpush1.msra.mxu0 0.0
    %1086 = vmatprep.subr.mxu0 0.0
    %1087 = vmatpush1.msra.mxu0 0.0
    %1088 = vmatprep.subr.mxu0 0.0
    %1089 = vmatpush1.msra.mxu0 0.0
    %1090 = vmatprep.subr.mxu0 0.0
    %1091 = vmatpush1.msra.mxu0 0.0
    %1092 = vmatprep.subr.mxu0 0.0
    %1093 = vmatpush1.msra.mxu0 0.0
    %1094 = vmatprep.subr.mxu0 0.0
    %1095 = vmatpush1.msra.mxu0 0.0
    %1096 = vmatprep.subr.mxu0 0.0
    %1097 = vmatpush1.msra.mxu0 %v223
    %1098 = vmatprep.subr.mxu0 0.0
    %1099 = vmatpush1.msra.mxu0 %v218
    %1100 = vmatprep.subr.mxu0 0.0
    %1101 = vmatpush2.msra.mxu0 0.0
    %1102 = vmatprep.subr.mxu0 0.0
    %1103 = vmatpush2.msra.mxu0 0.0
    %1104 = vmatprep.subr.mxu0 0.0
    %1105 = vmatpush2.msra.mxu0 0.0
    %1106 = vmatprep.subr.mxu0 0.0
    %1107 = vmatpush2.msra.mxu0 0.0
    %1108 = vmatprep.subr.mxu0 0.0
    %1109 = vmatpush2.msra.mxu0 0.0
    %1110 = vmatprep.subr.mxu0 0.0
    %1111 = vmatpush2.msra.mxu0 0.0
    %1112 = vmatprep.subr.mxu0 0.0
    %1113 = vmatpush2.msra.mxu0 0.0
    %1114 = vmatprep.subr.mxu0 0.0
    %1115 = vmatpush2.msra.mxu0 0.0
    %1116 = vmatprep.subr.mxu0 0.0
    %1117 = vmatpush2.msra.mxu0 0.0
    %1118 = vmatprep.subr.mxu0 0.0
    %1119 = vmatpush2.msra.mxu0 0.0
    %1120 = vmatprep.subr.mxu0 0.0
    %1121 = vmatpush2.msra.mxu0 0.0
    %1122 = vmatprep.subr.mxu0 0.0
    %1123 = vmatpush2.msra.mxu0 0.0
    %1124 = vmatprep.subr.mxu0 0.0
    %1125 = vmatpush2.msra.mxu0 0.0
    %1126 = vmatprep.subr.mxu0 0.0
    %1127 = vmatpush2.msra.mxu0 0.0
    %1128 = vmatprep.subr.mxu0 0.0
    %1129 = vmatpush2.msra.mxu0 0.0
    %1130 = vmatprep.subr.mxu0 0.0
    %1131 = vmatpush2.msra.mxu0 0.0
    %1132 = vmatprep.mubr.f32.mxu0 0.0
    %1133 = vmatmul.mubr.f32.gmra.mxu0 %v926
    %v1134 = vpop.f32.mrf.mxu0
    %v1135 = vadd.f32 0.0, %v1134
    %v1136 = vpop.f32.mrf.mxu0
    %1137 = vdwg.mxu0
    %1138 = vmatprep.subr.mxu0 0.0
    %1139 = vmatpush1.msra.mxu0 0.0
    %1140 = vmatprep.subr.mxu0 0.0
    %1141 = vmatpush1.msra.mxu0 0.0
    %1142 = vmatprep.subr.mxu0 0.0
    %1143 = vmatpush1.msra.mxu0 0.0
    %1144 = vmatprep.subr.mxu0 0.0
    %1145 = vmatpush1.msra.mxu0 0.0
    %1146 = vmatprep.subr.mxu0 0.0
    %1147 = vmatpush1.msra.mxu0 0.0
    %1148 = vmatprep.subr.mxu0 0.0
    %1149 = vmatpush1.msra.mxu0 0.0
    %1150 = vmatprep.subr.mxu0 0.0
    %1151 = vmatpush1.msra.mxu0 0.0
    %1152 = vmatprep.subr.mxu0 0.0
    %1153 = vmatpush1.msra.mxu0 0.0
    %1154 = vmatprep.subr.mxu0 0.0
    %1155 = vmatpush1.msra.mxu0 0.0
    %1156 = vmatprep.subr.mxu0 0.0
    %1157 = vmatpush1.msra.mxu0 0.0
    %1158 = vmatprep.subr.mxu0 0.0
    %1159 = vmatpush1.msra.mxu0 0.0
    %1160 = vmatprep.subr.mxu0 0.0
    %1161 = vmatpush1.msra.mxu0 0.0
    %1162 = vmatprep.subr.mxu0 0.0
    %1163 = vmatpush1.msra.mxu0 0.0
    %1164 = vmatprep.subr.mxu0 0.0
    %1165 = vmatpush1.msra.mxu0 0.0
    %1166 = vmatprep.subr.mxu0 0.0
    %1167 = vmatpush1.msra.mxu0 %v298
    %1168 = vmatprep.subr.mxu0 0.0
    %1169 = vmatpush1.msra.mxu0 %v293
    %1170 = vmatprep.subr.mxu0 0.0
    %1171 = vmatpush2.msra.mxu0 0.0
    %1172 = vmatprep.subr.mxu0 0.0
    %1173 = vmatpush2.msra.mxu0 0.0
    %1174 = vmatprep.subr.mxu0 0.0
    %1175 = vmatpush2.msra.mxu0 0.0
    %1176 = vmatprep.subr.mxu0 0.0
    %1177 = vmatpush2.msra.mxu0 0.0
    %1178 = vmatprep.subr.mxu0 0.0
    %1179 = vmatpush2.msra.mxu0 0.0
    %1180 = vmatprep.subr.mxu0 0.0
    %1181 = vmatpush2.msra.mxu0 0.0
    %1182 = vmatprep.subr.mxu0 0.0
    %1183 = vmatpush2.msra.mxu0 0.0
    %1184 = vmatprep.subr.mxu0 0.0
    %1185 = vmatpush2.msra.mxu0 0.0
    %1186 = vmatprep.subr.mxu0 0.0
    %1187 = vmatpush2.msra.mxu0 0.0
    %1188 = vmatprep.subr.mxu0 0.0
    %1189 = vmatpush2.msra.mxu0 0.0
    %1190 = vmatprep.subr.mxu0 0.0
    %1191 = vmatpush2.msra.mxu0 0.0
    %1192 = vmatprep.subr.mxu0 0.0
    %1193 = vmatpush2.msra.mxu0 0.0
    %1194 = vmatprep.subr.mxu0 0.0
    %1195 = vmatpush2.msra.mxu0 0.0
    %1196 = vmatprep.subr.mxu0 0.0
    %1197 = vmatpush2.msra.mxu0 0.0
    %1198 = vmatprep.subr.mxu0 0.0
    %1199 = vmatpush2.msra.mxu0 0.0
    %1200 = vmatprep.subr.mxu0 0.0
    %1201 = vmatpush2.msra.mxu0 0.0
    %1202 = vmatprep.mubr.f32.mxu0 0.0
    %1203 = vmatmul.mubr.f32.gmra.mxu0 %v926
    %v1204 = vpop.f32.mrf.mxu0
    %v1205 = vadd.f32 0.0, %v1204
    %v1206 = vpop.f32.mrf.mxu0
    %1207 = vdwg.mxu0
    %s1208 = sld [smem:[#allocation2 + $0x100]]
    %v1209 = vstv %s1208
    %v1210 = vmul.f32 %v1209, %v924
    %s1211 = sld [smem:[#allocation2 + $0x101]]
    %v1212 = vstv %s1211
    %v1213 = vmul.f32 %v1212, %v995
    %v1214 = vadd.f32 %v1210, %v1213
    %s1215 = sld [smem:[#allocation2 + $0x102]]
    %v1216 = vstv %s1215
    %v1217 = vmul.f32 %v1216, %v1065
    %v1218 = vadd.f32 %v1214, %v1217
    %s1219 = sld [smem:[#allocation2 + $0x103]]
    %v1220 = vstv %s1219
    %v1221 = vmul.f32 %v1220, %v1135
    %v1222 = vadd.f32 %v1218, %v1221
    %s1223 = sld [smem:[#allocation2 + $0x104]]
    %v1224 = vstv %s1223
    %v1225 = vmul.f32 %v1224, %v1205
    %v1226 = vadd.f32 %v1222, %v1225
    %v1227 = vmax.f32 %v1226, 0.0
    %v1228 = vsel %vm608, %v1227, 0.0
    %1229 = vadd.xlane.f32.xlu0 %v1228
    %v1230 = vpop.xlane.xlu0 %1229
    %v1231 = vmul.f32 %v1230, %v612
    %v1232 = vrcp.pop %v1231
    %v1233 = vmul.f32 %v1227, %v1232
    %v1235 = vsel %vm59, %v1233, 0
    %1237 = vmatprep.subr.mxu0 0.0
    %1238 = vmatpush1.msra.mxu0 0.0
    %1239 = vmatprep.subr.mxu0 0.0
    %1240 = vmatpush1.msra.mxu0 0.0
    %1241 = vmatprep.subr.mxu0 0.0
    %1242 = vmatpush1.msra.mxu0 0.0
    %1243 = vmatprep.subr.mxu0 0.0
    %1244 = vmatpush1.msra.mxu0 0.0
    %1245 = vmatprep.subr.mxu0 0.0
    %1246 = vmatpush1.msra.mxu0 0.0
    %1247 = vmatprep.subr.mxu0 0.0
    %1248 = vmatpush1.msra.mxu0 0.0
    %1249 = vmatprep.subr.mxu0 0.0
    %1250 = vmatpush1.msra.mxu0 0.0
    %1251 = vmatprep.subr.mxu0 0.0
    %1252 = vmatpush1.msra.mxu0 0.0
    %1253 = vmatprep.subr.mxu0 0.0
    %1254 = vmatpush1.msra.mxu0 0.0
    %1255 = vmatprep.subr.mxu0 0.0
    %1256 = vmatpush1.msra.mxu0 0.0
    %1257 = vmatprep.subr.mxu0 0.0
    %1258 = vmatpush1.msra.mxu0 0.0
    %1259 = vmatprep.subr.mxu0 0.0
    %1260 = vmatpush1.msra.mxu0 0.0
    %1261 = vmatprep.subr.mxu0 0.0
    %1262 = vmatpush1.msra.mxu0 0.0
    %1263 = vmatprep.subr.mxu0 0.0
    %1264 = vmatpush1.msra.mxu0 0.0
    %1265 = vmatprep.subr.mxu0 0.0
    %1266 = vmatpush1.msra.mxu0 %v63
    %1267 = vmatprep.subr.mxu0 0.0
    %1268 = vmatpush1.msra.mxu0 %v62
    %1269 = vmatprep.subr.mxu0 0.0
    %1270 = vmatpush2.msra.mxu0 0.0
    %1271 = vmatprep.subr.mxu0 0.0
    %1272 = vmatpush2.msra.mxu0 0.0
    %1273 = vmatprep.subr.mxu0 0.0
    %1274 = vmatpush2.msra.mxu0 0.0
    %1275 = vmatprep.subr.mxu0 0.0
    %1276 = vmatpush2.msra.mxu0 0.0
    %1277 = vmatprep.subr.mxu0 0.0
    %1278 = vmatpush2.msra.mxu0 0.0
    %1279 = vmatprep.subr.mxu0 0.0
    %1280 = vmatpush2.msra.mxu0 0.0
    %1281 = vmatprep.subr.mxu0 0.0
    %1282 = vmatpush2.msra.mxu0 0.0
    %1283 = vmatprep.subr.mxu0 0.0
    %1284 = vmatpush2.msra.mxu0 0.0
    %1285 = vmatprep.subr.mxu0 0.0
    %1286 = vmatpush2.msra.mxu0 0.0
    %1287 = vmatprep.subr.mxu0 0.0
    %1288 = vmatpush2.msra.mxu0 0.0
    %1289 = vmatprep.subr.mxu0 0.0
    %1290 = vmatpush2.msra.mxu0 0.0
    %1291 = vmatprep.subr.mxu0 0.0
    %1292 = vmatpush2.msra.mxu0 0.0
    %1293 = vmatprep.subr.mxu0 0.0
    %1294 = vmatpush2.msra.mxu0 0.0
    %1295 = vmatprep.subr.mxu0 0.0
    %1296 = vmatpush2.msra.mxu0 0.0
    %1297 = vmatprep.subr.mxu0 0.0
    %1298 = vmatpush2.msra.mxu0 0.0
    %1299 = vmatprep.subr.mxu0 0.0
    %1300 = vmatpush2.msra.mxu0 0.0
    %1301 = vmatprep.mubr.f32.mxu0 0.0
    %1302 = vmatmul.mubr.f32.gmra.mxu0 %v1235
    %v1303 = vpop.f32.mrf.mxu0
    %v1304 = vadd.f32 0.0, %v1303
    %v1305 = vpop.f32.mrf.mxu0
    %1306 = vdwg.mxu0
    %1307 = vmatprep.subr.mxu0 0.0
    %1308 = vmatpush1.msra.mxu0 0.0
    %1309 = vmatprep.subr.mxu0 0.0
    %1310 = vmatpush1.msra.mxu0 0.0
    %1311 = vmatprep.subr.mxu0 0.0
    %1312 = vmatpush1.msra.mxu0 0.0
    %1313 = vmatprep.subr.mxu0 0.0
    %1314 = vmatpush1.msra.mxu0 0.0
    %1315 = vmatprep.subr.mxu0 0.0
    %1316 = vmatpush1.msra.mxu0 0.0
    %1317 = vmatprep.subr.mxu0 0.0
    %1318 = vmatpush1.msra.mxu0 0.0
    %1319 = vmatprep.subr.mxu0 0.0
    %1320 = vmatpush1.msra.mxu0 0.0
    %1321 = vmatprep.subr.mxu0 0.0
    %1322 = vmatpush1.msra.mxu0 0.0
    %1323 = vmatprep.subr.mxu0 0.0
    %1324 = vmatpush1.msra.mxu0 0.0
    %1325 = vmatprep.subr.mxu0 0.0
    %1326 = vmatpush1.msra.mxu0 0.0
    %1327 = vmatprep.subr.mxu0 0.0
    %1328 = vmatpush1.msra.mxu0 0.0
    %1329 = vmatprep.subr.mxu0 0.0
    %1330 = vmatpush1.msra.mxu0 0.0
    %1331 = vmatprep.subr.mxu0 0.0
    %1332 = vmatpush1.msra.mxu0 0.0
    %1333 = vmatprep.subr.mxu0 0.0
    %1334 = vmatpush1.msra.mxu0 0.0
    %1335 = vmatprep.subr.mxu0 0.0
    %1336 = vmatpush1.msra.mxu0 %v142
    %1337 = vmatprep.subr.mxu0 0.0
    %1338 = vmatpush1.msra.mxu0 %v137
    %1339 = vmatprep.subr.mxu0 0.0
    %1340 = vmatpush2.msra.mxu0 0.0
    %1341 = vmatprep.subr.mxu0 0.0
    %1342 = vmatpush2.msra.mxu0 0.0
    %1343 = vmatprep.subr.mxu0 0.0
    %1344 = vmatpush2.msra.mxu0 0.0
    %1345 = vmatprep.subr.mxu0 0.0
    %1346 = vmatpush2.msra.mxu0 0.0
    %1347 = vmatprep.subr.mxu0 0.0
    %1348 = vmatpush2.msra.mxu0 0.0
    %1349 = vmatprep.subr.mxu0 0.0
    %1350 = vmatpush2.msra.mxu0 0.0
    %1351 = vmatprep.subr.mxu0 0.0
    %1352 = vmatpush2.msra.mxu0 0.0
    %1353 = vmatprep.subr.mxu0 0.0
    %1354 = vmatpush2.msra.mxu0 0.0
    %1355 = vmatprep.subr.mxu0 0.0
    %1356 = vmatpush2.msra.mxu0 0.0
    %1357 = vmatprep.subr.mxu0 0.0
    %1358 = vmatpush2.msra.mxu0 0.0
    %1359 = vmatprep.subr.mxu0 0.0
    %1360 = vmatpush2.msra.mxu0 0.0
    %1361 = vmatprep.subr.mxu0 0.0
    %1362 = vmatpush2.msra.mxu0 0.0
    %1363 = vmatprep.subr.mxu0 0.0
    %1364 = vmatpush2.msra.mxu0 0.0
    %1365 = vmatprep.subr.mxu0 0.0
    %1366 = vmatpush2.msra.mxu0 0.0
    %1367 = vmatprep.subr.mxu0 0.0
    %1368 = vmatpush2.msra.mxu0 0.0
    %1369 = vmatprep.subr.mxu0 0.0
    %1370 = vmatpush2.msra.mxu0 0.0
    %1371 = vmatprep.mubr.f32.mxu0 0.0
    %1372 = vmatmul.mubr.f32.gmra.mxu0 %v1235
    %v1373 = vpop.f32.mrf.mxu0
    %v1374 = vadd.f32 0.0, %v1373
    %v1375 = vpop.f32.mrf.mxu0
    %1376 = vdwg.mxu0
    %1377 = vmatprep.subr.mxu0 0.0
    %1378 = vmatpush1.msra.mxu0 0.0
    %1379 = vmatprep.subr.mxu0 0.0
    %1380 = vmatpush1.msra.mxu0 0.0
    %1381 = vmatprep.subr.mxu0 0.0
    %1382 = vmatpush1.msra.mxu0 0.0
    %1383 = vmatprep.subr.mxu0 0.0
    %1384 = vmatpush1.msra.mxu0 0.0
    %1385 = vmatprep.subr.mxu0 0.0
    %1386 = vmatpush1.msra.mxu0 0.0
    %1387 = vmatprep.subr.mxu0 0.0
    %1388 = vmatpush1.msra.mxu0 0.0
    %1389 = vmatprep.subr.mxu0 0.0
    %1390 = vmatpush1.msra.mxu0 0.0
    %1391 = vmatprep.subr.mxu0 0.0
    %1392 = vmatpush1.msra.mxu0 0.0
    %1393 = vmatprep.subr.mxu0 0.0
    %1394 = vmatpush1.msra.mxu0 0.0
    %1395 = vmatprep.subr.mxu0 0.0
    %1396 = vmatpush1.msra.mxu0 0.0
    %1397 = vmatprep.subr.mxu0 0.0
    %1398 = vmatpush1.msra.mxu0 0.0
    %1399 = vmatprep.subr.mxu0 0.0
    %1400 = vmatpush1.msra.mxu0 0.0
    %1401 = vmatprep.subr.mxu0 0.0
    %1402 = vmatpush1.msra.mxu0 0.0
    %1403 = vmatprep.subr.mxu0 0.0
    %1404 = vmatpush1.msra.mxu0 0.0
    %1405 = vmatprep.subr.mxu0 0.0
    %1406 = vmatpush1.msra.mxu0 %v223
    %1407 = vmatprep.subr.mxu0 0.0
    %1408 = vmatpush1.msra.mxu0 %v218
    %1409 = vmatprep.subr.mxu0 0.0
    %1410 = vmatpush2.msra.mxu0 0.0
    %1411 = vmatprep.subr.mxu0 0.0
    %1412 = vmatpush2.msra.mxu0 0.0
    %1413 = vmatprep.subr.mxu0 0.0
    %1414 = vmatpush2.msra.mxu0 0.0
    %1415 = vmatprep.subr.mxu0 0.0
    %1416 = vmatpush2.msra.mxu0 0.0
    %1417 = vmatprep.subr.mxu0 0.0
    %1418 = vmatpush2.msra.mxu0 0.0
    %1419 = vmatprep.subr.mxu0 0.0
    %1420 = vmatpush2.msra.mxu0 0.0
    %1421 = vmatprep.subr.mxu0 0.0
    %1422 = vmatpush2.msra.mxu0 0.0
    %1423 = vmatprep.subr.mxu0 0.0
    %1424 = vmatpush2.msra.mxu0 0.0
    %1425 = vmatprep.subr.mxu0 0.0
    %1426 = vmatpush2.msra.mxu0 0.0
    %1427 = vmatprep.subr.mxu0 0.0
    %1428 = vmatpush2.msra.mxu0 0.0
    %1429 = vmatprep.subr.mxu0 0.0
    %1430 = vmatpush2.msra.mxu0 0.0
    %1431 = vmatprep.subr.mxu0 0.0
    %1432 = vmatpush2.msra.mxu0 0.0
    %1433 = vmatprep.subr.mxu0 0.0
    %1434 = vmatpush2.msra.mxu0 0.0
    %1435 = vmatprep.subr.mxu0 0.0
    %1436 = vmatpush2.msra.mxu0 0.0
    %1437 = vmatprep.subr.mxu0 0.0
    %1438 = vmatpush2.msra.mxu0 0.0
    %1439 = vmatprep.subr.mxu0 0.0
    %1440 = vmatpush2.msra.mxu0 0.0
    %1441 = vmatprep.mubr.f32.mxu0 0.0
    %1442 = vmatmul.mubr.f32.gmra.mxu0 %v1235
    %v1443 = vpop.f32.mrf.mxu0
    %v1444 = vadd.f32 0.0, %v1443
    %v1445 = vpop.f32.mrf.mxu0
    %1446 = vdwg.mxu0
    %1447 = vmatprep.subr.mxu0 0.0
    %1448 = vmatpush1.msra.mxu0 0.0
    %1449 = vmatprep.subr.mxu0 0.0
    %1450 = vmatpush1.msra.mxu0 0.0
    %1451 = vmatprep.subr.mxu0 0.0
    %1452 = vmatpush1.msra.mxu0 0.0
    %1453 = vmatprep.subr.mxu0 0.0
    %1454 = vmatpush1.msra.mxu0 0.0
    %1455 = vmatprep.subr.mxu0 0.0
    %1456 = vmatpush1.msra.mxu0 0.0
    %1457 = vmatprep.subr.mxu0 0.0
    %1458 = vmatpush1.msra.mxu0 0.0
    %1459 = vmatprep.subr.mxu0 0.0
    %1460 = vmatpush1.msra.mxu0 0.0
    %1461 = vmatprep.subr.mxu0 0.0
    %1462 = vmatpush1.msra.mxu0 0.0
    %1463 = vmatprep.subr.mxu0 0.0
    %1464 = vmatpush1.msra.mxu0 0.0
    %1465 = vmatprep.subr.mxu0 0.0
    %1466 = vmatpush1.msra.mxu0 0.0
    %1467 = vmatprep.subr.mxu0 0.0
    %1468 = vmatpush1.msra.mxu0 0.0
    %1469 = vmatprep.subr.mxu0 0.0
    %1470 = vmatpush1.msra.mxu0 0.0
    %1471 = vmatprep.subr.mxu0 0.0
    %1472 = vmatpush1.msra.mxu0 0.0
    %1473 = vmatprep.subr.mxu0 0.0
    %1474 = vmatpush1.msra.mxu0 0.0
    %1475 = vmatprep.subr.mxu0 0.0
    %1476 = vmatpush1.msra.mxu0 %v298
    %1477 = vmatprep.subr.mxu0 0.0
    %1478 = vmatpush1.msra.mxu0 %v293
    %1479 = vmatprep.subr.mxu0 0.0
    %1480 = vmatpush2.msra.mxu0 0.0
    %1481 = vmatprep.subr.mxu0 0.0
    %1482 = vmatpush2.msra.mxu0 0.0
    %1483 = vmatprep.subr.mxu0 0.0
    %1484 = vmatpush2.msra.mxu0 0.0
    %1485 = vmatprep.subr.mxu0 0.0
    %1486 = vmatpush2.msra.mxu0 0.0
    %1487 = vmatprep.subr.mxu0 0.0
    %1488 = vmatpush2.msra.mxu0 0.0
    %1489 = vmatprep.subr.mxu0 0.0
    %1490 = vmatpush2.msra.mxu0 0.0
    %1491 = vmatprep.subr.mxu0 0.0
    %1492 = vmatpush2.msra.mxu0 0.0
    %1493 = vmatprep.subr.mxu0 0.0
    %1494 = vmatpush2.msra.mxu0 0.0
    %1495 = vmatprep.subr.mxu0 0.0
    %1496 = vmatpush2.msra.mxu0 0.0
    %1497 = vmatprep.subr.mxu0 0.0
    %1498 = vmatpush2.msra.mxu0 0.0
    %1499 = vmatprep.subr.mxu0 0.0
    %1500 = vmatpush2.msra.mxu0 0.0
    %1501 = vmatprep.subr.mxu0 0.0
    %1502 = vmatpush2.msra.mxu0 0.0
    %1503 = vmatprep.subr.mxu0 0.0
    %1504 = vmatpush2.msra.mxu0 0.0
    %1505 = vmatprep.subr.mxu0 0.0
    %1506 = vmatpush2.msra.mxu0 0.0
    %1507 = vmatprep.subr.mxu0 0.0
    %1508 = vmatpush2.msra.mxu0 0.0
    %1509 = vmatprep.subr.mxu0 0.0
    %1510 = vmatpush2.msra.mxu0 0.0
    %1511 = vmatprep.mubr.f32.mxu0 0.0
    %1512 = vmatmul.mubr.f32.gmra.mxu0 %v1235
    %v1513 = vpop.f32.mrf.mxu0
    %v1514 = vadd.f32 0.0, %v1513
    %v1515 = vpop.f32.mrf.mxu0
    %1516 = vdwg.mxu0
    %s1517 = sld [smem:[#allocation2 + $0x180]]
    %v1518 = vstv %s1517
    %v1519 = vmul.f32 %v1518, %v1233
    %s1520 = sld [smem:[#allocation2 + $0x181]]
    %v1521 = vstv %s1520
    %v1522 = vmul.f32 %v1521, %v1304
    %v1523 = vadd.f32 %v1519, %v1522
    %s1524 = sld [smem:[#allocation2 + $0x182]]
    %v1525 = vstv %s1524
    %v1526 = vmul.f32 %v1525, %v1374
    %v1527 = vadd.f32 %v1523, %v1526
    %s1528 = sld [smem:[#allocation2 + $0x183]]
    %v1529 = vstv %s1528
    %v1530 = vmul.f32 %v1529, %v1444
    %v1531 = vadd.f32 %v1527, %v1530
    %s1532 = sld [smem:[#allocation2 + $0x184]]
    %v1533 = vstv %s1532
    %v1534 = vmul.f32 %v1533, %v1514
    %v1535 = vadd.f32 %v1531, %v1534
    %v1536 = vmax.f32 %v1535, 0.0
    %v1537 = vsel %vm608, %v1536, 0.0
    %1538 = vadd.xlane.f32.xlu0 %v1537
    %v1539 = vpop.xlane.xlu0 %1538
    %v1540 = vmul.f32 %v1539, %v612
    %v1541 = vrcp.pop %v1540
    %v1542 = vmul.f32 %v1536, %v1541
    %v1544 = vsel %vm59, %v1542, 0
    %1546 = vmatprep.subr.mxu0 0.0
    %1547 = vmatpush1.msra.mxu0 0.0
    %1548 = vmatprep.subr.mxu0 0.0
    %1549 = vmatpush1.msra.mxu0 0.0
    %1550 = vmatprep.subr.mxu0 0.0
    %1551 = vmatpush1.msra.mxu0 0.0
    %1552 = vmatprep.subr.mxu0 0.0
    %1553 = vmatpush1.msra.mxu0 0.0
    %1554 = vmatprep.subr.mxu0 0.0
    %1555 = vmatpush1.msra.mxu0 0.0
    %1556 = vmatprep.subr.mxu0 0.0
    %1557 = vmatpush1.msra.mxu0 0.0
    %1558 = vmatprep.subr.mxu0 0.0
    %1559 = vmatpush1.msra.mxu0 0.0
    %1560 = vmatprep.subr.mxu0 0.0
    %1561 = vmatpush1.msra.mxu0 0.0
    %1562 = vmatprep.subr.mxu0 0.0
    %1563 = vmatpush1.msra.mxu0 0.0
    %1564 = vmatprep.subr.mxu0 0.0
    %1565 = vmatpush1.msra.mxu0 0.0
    %1566 = vmatprep.subr.mxu0 0.0
    %1567 = vmatpush1.msra.mxu0 0.0
    %1568 = vmatprep.subr.mxu0 0.0
    %1569 = vmatpush1.msra.mxu0 0.0
    %1570 = vmatprep.subr.mxu0 0.0
    %1571 = vmatpush1.msra.mxu0 0.0
    %1572 = vmatprep.subr.mxu0 0.0
    %1573 = vmatpush1.msra.mxu0 0.0
    %1574 = vmatprep.subr.mxu0 0.0
    %1575 = vmatpush1.msra.mxu0 %v63
    %1576 = vmatprep.subr.mxu0 0.0
    %1577 = vmatpush1.msra.mxu0 %v62
    %1578 = vmatprep.subr.mxu0 0.0
    %1579 = vmatpush2.msra.mxu0 0.0
    %1580 = vmatprep.subr.mxu0 0.0
    %1581 = vmatpush2.msra.mxu0 0.0
    %1582 = vmatprep.subr.mxu0 0.0
    %1583 = vmatpush2.msra.mxu0 0.0
    %1584 = vmatprep.subr.mxu0 0.0
    %1585 = vmatpush2.msra.mxu0 0.0
    %1586 = vmatprep.subr.mxu0 0.0
    %1587 = vmatpush2.msra.mxu0 0.0
    %1588 = vmatprep.subr.mxu0 0.0
    %1589 = vmatpush2.msra.mxu0 0.0
    %1590 = vmatprep.subr.mxu0 0.0
    %1591 = vmatpush2.msra.mxu0 0.0
    %1592 = vmatprep.subr.mxu0 0.0
    %1593 = vmatpush2.msra.mxu0 0.0
    %1594 = vmatprep.subr.mxu0 0.0
    %1595 = vmatpush2.msra.mxu0 0.0
    %1596 = vmatprep.subr.mxu0 0.0
    %1597 = vmatpush2.msra.mxu0 0.0
    %1598 = vmatprep.subr.mxu0 0.0
    %1599 = vmatpush2.msra.mxu0 0.0
    %1600 = vmatprep.subr.mxu0 0.0
    %1601 = vmatpush2.msra.mxu0 0.0
    %1602 = vmatprep.subr.mxu0 0.0
    %1603 = vmatpush2.msra.mxu0 0.0
    %1604 = vmatprep.subr.mxu0 0.0
    %1605 = vmatpush2.msra.mxu0 0.0
    %1606 = vmatprep.subr.mxu0 0.0
    %1607 = vmatpush2.msra.mxu0 0.0
    %1608 = vmatprep.subr.mxu0 0.0
    %1609 = vmatpush2.msra.mxu0 0.0
    %1610 = vmatprep.mubr.f32.mxu0 0.0
    %1611 = vmatmul.mubr.f32.gmra.mxu0 %v1544
    %v1612 = vpop.f32.mrf.mxu0
    %v1613 = vadd.f32 0.0, %v1612
    %v1614 = vpop.f32.mrf.mxu0
    %1615 = vdwg.mxu0
    %1616 = vmatprep.subr.mxu0 0.0
    %1617 = vmatpush1.msra.mxu0 0.0
    %1618 = vmatprep.subr.mxu0 0.0
    %1619 = vmatpush1.msra.mxu0 0.0
    %1620 = vmatprep.subr.mxu0 0.0
    %1621 = vmatpush1.msra.mxu0 0.0
    %1622 = vmatprep.subr.mxu0 0.0
    %1623 = vmatpush1.msra.mxu0 0.0
    %1624 = vmatprep.subr.mxu0 0.0
    %1625 = vmatpush1.msra.mxu0 0.0
    %1626 = vmatprep.subr.mxu0 0.0
    %1627 = vmatpush1.msra.mxu0 0.0
    %1628 = vmatprep.subr.mxu0 0.0
    %1629 = vmatpush1.msra.mxu0 0.0
    %1630 = vmatprep.subr.mxu0 0.0
    %1631 = vmatpush1.msra.mxu0 0.0
    %1632 = vmatprep.subr.mxu0 0.0
    %1633 = vmatpush1.msra.mxu0 0.0
    %1634 = vmatprep.subr.mxu0 0.0
    %1635 = vmatpush1.msra.mxu0 0.0
    %1636 = vmatprep.subr.mxu0 0.0
    %1637 = vmatpush1.msra.mxu0 0.0
    %1638 = vmatprep.subr.mxu0 0.0
    %1639 = vmatpush1.msra.mxu0 0.0
    %1640 = vmatprep.subr.mxu0 0.0
    %1641 = vmatpush1.msra.mxu0 0.0
    %1642 = vmatprep.subr.mxu0 0.0
    %1643 = vmatpush1.msra.mxu0 0.0
    %1644 = vmatprep.subr.mxu0 0.0
    %1645 = vmatpush1.msra.mxu0 %v142
    %1646 = vmatprep.subr.mxu0 0.0
    %1647 = vmatpush1.msra.mxu0 %v137
    %1648 = vmatprep.subr.mxu0 0.0
    %1649 = vmatpush2.msra.mxu0 0.0
    %1650 = vmatprep.subr.mxu0 0.0
    %1651 = vmatpush2.msra.mxu0 0.0
    %1652 = vmatprep.subr.mxu0 0.0
    %1653 = vmatpush2.msra.mxu0 0.0
    %1654 = vmatprep.subr.mxu0 0.0
    %1655 = vmatpush2.msra.mxu0 0.0
    %1656 = vmatprep.subr.mxu0 0.0
    %1657 = vmatpush2.msra.mxu0 0.0
    %1658 = vmatprep.subr.mxu0 0.0
    %1659 = vmatpush2.msra.mxu0 0.0
    %1660 = vmatprep.subr.mxu0 0.0
    %1661 = vmatpush2.msra.mxu0 0.0
    %1662 = vmatprep.subr.mxu0 0.0
    %1663 = vmatpush2.msra.mxu0 0.0
    %1664 = vmatprep.subr.mxu0 0.0
    %1665 = vmatpush2.msra.mxu0 0.0
    %1666 = vmatprep.subr.mxu0 0.0
    %1667 = vmatpush2.msra.mxu0 0.0
    %1668 = vmatprep.subr.mxu0 0.0
    %1669 = vmatpush2.msra.mxu0 0.0
    %1670 = vmatprep.subr.mxu0 0.0
    %1671 = vmatpush2.msra.mxu0 0.0
    %1672 = vmatprep.subr.mxu0 0.0
    %1673 = vmatpush2.msra.mxu0 0.0
    %1674 = vmatprep.subr.mxu0 0.0
    %1675 = vmatpush2.msra.mxu0 0.0
    %1676 = vmatprep.subr.mxu0 0.0
    %1677 = vmatpush2.msra.mxu0 0.0
    %1678 = vmatprep.subr.mxu0 0.0
    %1679 = vmatpush2.msra.mxu0 0.0
    %1680 = vmatprep.mubr.f32.mxu0 0.0
    %1681 = vmatmul.mubr.f32.gmra.mxu0 %v1544
    %v1682 = vpop.f32.mrf.mxu0
    %v1683 = vadd.f32 0.0, %v1682
    %v1684 = vpop.f32.mrf.mxu0
    %1685 = vdwg.mxu0
    %1686 = vmatprep.subr.mxu0 0.0
    %1687 = vmatpush1.msra.mxu0 0.0
    %1688 = vmatprep.subr.mxu0 0.0
    %1689 = vmatpush1.msra.mxu0 0.0
    %1690 = vmatprep.subr.mxu0 0.0
    %1691 = vmatpush1.msra.mxu0 0.0
    %1692 = vmatprep.subr.mxu0 0.0
    %1693 = vmatpush1.msra.mxu0 0.0
    %1694 = vmatprep.subr.mxu0 0.0
    %1695 = vmatpush1.msra.mxu0 0.0
    %1696 = vmatprep.subr.mxu0 0.0
    %1697 = vmatpush1.msra.mxu0 0.0
    %1698 = vmatprep.subr.mxu0 0.0
    %1699 = vmatpush1.msra.mxu0 0.0
    %1700 = vmatprep.subr.mxu0 0.0
    %1701 = vmatpush1.msra.mxu0 0.0
    %1702 = vmatprep.subr.mxu0 0.0
    %1703 = vmatpush1.msra.mxu0 0.0
    %1704 = vmatprep.subr.mxu0 0.0
    %1705 = vmatpush1.msra.mxu0 0.0
    %1706 = vmatprep.subr.mxu0 0.0
    %1707 = vmatpush1.msra.mxu0 0.0
    %1708 = vmatprep.subr.mxu0 0.0
    %1709 = vmatpush1.msra.mxu0 0.0
    %1710 = vmatprep.subr.mxu0 0.0
    %1711 = vmatpush1.msra.mxu0 0.0
    %1712 = vmatprep.subr.mxu0 0.0
    %1713 = vmatpush1.msra.mxu0 0.0
    %1714 = vmatprep.subr.mxu0 0.0
    %1715 = vmatpush1.msra.mxu0 %v223
    %1716 = vmatprep.subr.mxu0 0.0
    %1717 = vmatpush1.msra.mxu0 %v218
    %1718 = vmatprep.subr.mxu0 0.0
    %1719 = vmatpush2.msra.mxu0 0.0
    %1720 = vmatprep.subr.mxu0 0.0
    %1721 = vmatpush2.msra.mxu0 0.0
    %1722 = vmatprep.subr.mxu0 0.0
    %1723 = vmatpush2.msra.mxu0 0.0
    %1724 = vmatprep.subr.mxu0 0.0
    %1725 = vmatpush2.msra.mxu0 0.0
    %1726 = vmatprep.subr.mxu0 0.0
    %1727 = vmatpush2.msra.mxu0 0.0
    %1728 = vmatprep.subr.mxu0 0.0
    %1729 = vmatpush2.msra.mxu0 0.0
    %1730 = vmatprep.subr.mxu0 0.0
    %1731 = vmatpush2.msra.mxu0 0.0
    %1732 = vmatprep.subr.mxu0 0.0
    %1733 = vmatpush2.msra.mxu0 0.0
    %1734 = vmatprep.subr.mxu0 0.0
    %1735 = vmatpush2.msra.mxu0 0.0
    %1736 = vmatprep.subr.mxu0 0.0
    %1737 = vmatpush2.msra.mxu0 0.0
    %1738 = vmatprep.subr.mxu0 0.0
    %1739 = vmatpush2.msra.mxu0 0.0
    %1740 = vmatprep.subr.mxu0 0.0
    %1741 = vmatpush2.msra.mxu0 0.0
    %1742 = vmatprep.subr.mxu0 0.0
    %1743 = vmatpush2.msra.mxu0 0.0
    %1744 = vmatprep.subr.mxu0 0.0
    %1745 = vmatpush2.msra.mxu0 0.0
    %1746 = vmatprep.subr.mxu0 0.0
    %1747 = vmatpush2.msra.mxu0 0.0
    %1748 = vmatprep.subr.mxu0 0.0
    %1749 = vmatpush2.msra.mxu0 0.0
    %1750 = vmatprep.mubr.f32.mxu0 0.0
    %1751 = vmatmul.mubr.f32.gmra.mxu0 %v1544
    %v1752 = vpop.f32.mrf.mxu0
    %v1753 = vadd.f32 0.0, %v1752
    %v1754 = vpop.f32.mrf.mxu0
    %1755 = vdwg.mxu0
    %1756 = vmatprep.subr.mxu0 0.0
    %1757 = vmatpush1.msra.mxu0 0.0
    %1758 = vmatprep.subr.mxu0 0.0
    %1759 = vmatpush1.msra.mxu0 0.0
    %1760 = vmatprep.subr.mxu0 0.0
    %1761 = vmatpush1.msra.mxu0 0.0
    %1762 = vmatprep.subr.mxu0 0.0
    %1763 = vmatpush1.msra.mxu0 0.0
    %1764 = vmatprep.subr.mxu0 0.0
    %1765 = vmatpush1.msra.mxu0 0.0
    %1766 = vmatprep.subr.mxu0 0.0
    %1767 = vmatpush1.msra.mxu0 0.0
    %1768 = vmatprep.subr.mxu0 0.0
    %1769 = vmatpush1.msra.mxu0 0.0
    %1770 = vmatprep.subr.mxu0 0.0
    %1771 = vmatpush1.msra.mxu0 0.0
    %1772 = vmatprep.subr.mxu0 0.0
    %1773 = vmatpush1.msra.mxu0 0.0
    %1774 = vmatprep.subr.mxu0 0.0
    %1775 = vmatpush1.msra.mxu0 0.0
    %1776 = vmatprep.subr.mxu0 0.0
    %1777 = vmatpush1.msra.mxu0 0.0
    %1778 = vmatprep.subr.mxu0 0.0
    %1779 = vmatpush1.msra.mxu0 0.0
    %1780 = vmatprep.subr.mxu0 0.0
    %1781 = vmatpush1.msra.mxu0 0.0
    %1782 = vmatprep.subr.mxu0 0.0
    %1783 = vmatpush1.msra.mxu0 0.0
    %1784 = vmatprep.subr.mxu0 0.0
    %1785 = vmatpush1.msra.mxu0 %v298
    %1786 = vmatprep.subr.mxu0 0.0
    %1787 = vmatpush1.msra.mxu0 %v293
    %1788 = vmatprep.subr.mxu0 0.0
    %1789 = vmatpush2.msra.mxu0 0.0
    %1790 = vmatprep.subr.mxu0 0.0
    %1791 = vmatpush2.msra.mxu0 0.0
    %1792 = vmatprep.subr.mxu0 0.0
    %1793 = vmatpush2.msra.mxu0 0.0
    %1794 = vmatprep.subr.mxu0 0.0
    %1795 = vmatpush2.msra.mxu0 0.0
    %1796 = vmatprep.subr.mxu0 0.0
    %1797 = vmatpush2.msra.mxu0 0.0
    %1798 = vmatprep.subr.mxu0 0.0
    %1799 = vmatpush2.msra.mxu0 0.0
    %1800 = vmatprep.subr.mxu0 0.0
    %1801 = vmatpush2.msra.mxu0 0.0
    %1802 = vmatprep.subr.mxu0 0.0
    %1803 = vmatpush2.msra.mxu0 0.0
    %1804 = vmatprep.subr.mxu0 0.0
    %1805 = vmatpush2.msra.mxu0 0.0
    %1806 = vmatprep.subr.mxu0 0.0
    %1807 = vmatpush2.msra.mxu0 0.0
    %1808 = vmatprep.subr.mxu0 0.0
    %1809 = vmatpush2.msra.mxu0 0.0
    %1810 = vmatprep.subr.mxu0 0.0
    %1811 = vmatpush2.msra.mxu0 0.0
    %1812 = vmatprep.subr.mxu0 0.0
    %1813 = vmatpush2.msra.mxu0 0.0
    %1814 = vmatprep.subr.mxu0 0.0
    %1815 = vmatpush2.msra.mxu0 0.0
    %1816 = vmatprep.subr.mxu0 0.0
    %1817 = vmatpush2.msra.mxu0 0.0
    %1818 = vmatprep.subr.mxu0 0.0
    %1819 = vmatpush2.msra.mxu0 0.0
    %1820 = vmatprep.mubr.f32.mxu0 0.0
    %1821 = vmatmul.mubr.f32.gmra.mxu0 %v1544
    %v1822 = vpop.f32.mrf.mxu0
    %v1823 = vadd.f32 0.0, %v1822
    %v1824 = vpop.f32.mrf.mxu0
    %1825 = vdwg.mxu0
    %s1826 = sld [smem:[#allocation2 + $0x200]]
    %v1827 = vstv %s1826
    %v1828 = vmul.f32 %v1827, %v1542
    %s1829 = sld [smem:[#allocation2 + $0x201]]
    %v1830 = vstv %s1829
    %v1831 = vmul.f32 %v1830, %v1613
    %v1832 = vadd.f32 %v1828, %v1831
    %s1833 = sld [smem:[#allocation2 + $0x202]]
    %v1834 = vstv %s1833
    %v1835 = vmul.f32 %v1834, %v1683
    %v1836 = vadd.f32 %v1832, %v1835
    %s1837 = sld [smem:[#allocation2 + $0x203]]
    %v1838 = vstv %s1837
    %v1839 = vmul.f32 %v1838, %v1753
    %v1840 = vadd.f32 %v1836, %v1839
    %s1841 = sld [smem:[#allocation2 + $0x204]]
    %v1842 = vstv %s1841
    %v1843 = vmul.f32 %v1842, %v1823
    %v1844 = vadd.f32 %v1840, %v1843
    %v1845 = vmax.f32 %v1844, 0.0
    %v1846 = vsel %vm608, %v1845, 0.0
    %1847 = vadd.xlane.f32.xlu0 %v1846
    %v1848 = vpop.xlane.xlu0 %1847
    %v1849 = vmul.f32 %v1848, %v612
    %v1850 = vrcp.pop %v1849
    %v1851 = vmul.f32 %v1845, %v1850
    %v1853 = vsel %vm59, %v1851, 0
    %1855 = vmatprep.subr.mxu0 0.0
    %1856 = vmatpush1.msra.mxu0 0.0
    %1857 = vmatprep.subr.mxu0 0.0
    %1858 = vmatpush1.msra.mxu0 0.0
    %1859 = vmatprep.subr.mxu0 0.0
    %1860 = vmatpush1.msra.mxu0 0.0
    %1861 = vmatprep.subr.mxu0 0.0
    %1862 = vmatpush1.msra.mxu0 0.0
    %1863 = vmatprep.subr.mxu0 0.0
    %1864 = vmatpush1.msra.mxu0 0.0
    %1865 = vmatprep.subr.mxu0 0.0
    %1866 = vmatpush1.msra.mxu0 0.0
    %1867 = vmatprep.subr.mxu0 0.0
    %1868 = vmatpush1.msra.mxu0 0.0
    %1869 = vmatprep.subr.mxu0 0.0
    %1870 = vmatpush1.msra.mxu0 0.0
    %1871 = vmatprep.subr.mxu0 0.0
    %1872 = vmatpush1.msra.mxu0 0.0
    %1873 = vmatprep.subr.mxu0 0.0
    %1874 = vmatpush1.msra.mxu0 0.0
    %1875 = vmatprep.subr.mxu0 0.0
    %1876 = vmatpush1.msra.mxu0 0.0
    %1877 = vmatprep.subr.mxu0 0.0
    %1878 = vmatpush1.msra.mxu0 0.0
    %1879 = vmatprep.subr.mxu0 0.0
    %1880 = vmatpush1.msra.mxu0 0.0
    %1881 = vmatprep.subr.mxu0 0.0
    %1882 = vmatpush1.msra.mxu0 0.0
    %1883 = vmatprep.subr.mxu0 0.0
    %1884 = vmatpush1.msra.mxu0 %v63
    %1885 = vmatprep.subr.mxu0 0.0
    %1886 = vmatpush1.msra.mxu0 %v62
    %1887 = vmatprep.subr.mxu0 0.0
    %1888 = vmatpush2.msra.mxu0 0.0
    %1889 = vmatprep.subr.mxu0 0.0
    %1890 = vmatpush2.msra.mxu0 0.0
    %1891 = vmatprep.subr.mxu0 0.0
    %1892 = vmatpush2.msra.mxu0 0.0
    %1893 = vmatprep.subr.mxu0 0.0
    %1894 = vmatpush2.msra.mxu0 0.0
    %1895 = vmatprep.subr.mxu0 0.0
    %1896 = vmatpush2.msra.mxu0 0.0
    %1897 = vmatprep.subr.mxu0 0.0
    %1898 = vmatpush2.msra.mxu0 0.0
    %1899 = vmatprep.subr.mxu0 0.0
    %1900 = vmatpush2.msra.mxu0 0.0
    %1901 = vmatprep.subr.mxu0 0.0
    %1902 = vmatpush2.msra.mxu0 0.0
    %1903 = vmatprep.subr.mxu0 0.0
    %1904 = vmatpush2.msra.mxu0 0.0
    %1905 = vmatprep.subr.mxu0 0.0
    %1906 = vmatpush2.msra.mxu0 0.0
    %1907 = vmatprep.subr.mxu0 0.0
    %1908 = vmatpush2.msra.mxu0 0.0
    %1909 = vmatprep.subr.mxu0 0.0
    %1910 = vmatpush2.msra.mxu0 0.0
    %1911 = vmatprep.subr.mxu0 0.0
    %1912 = vmatpush2.msra.mxu0 0.0
    %1913 = vmatprep.subr.mxu0 0.0
    %1914 = vmatpush2.msra.mxu0 0.0
    %1915 = vmatprep.subr.mxu0 0.0
    %1916 = vmatpush2.msra.mxu0 0.0
    %1917 = vmatprep.subr.mxu0 0.0
    %1918 = vmatpush2.msra.mxu0 0.0
    %1919 = vmatprep.mubr.f32.mxu0 0.0
    %1920 = vmatmul.mubr.f32.gmra.mxu0 %v1853
    %v1921 = vpop.f32.mrf.mxu0
    %v1922 = vadd.f32 0.0, %v1921
    %v1923 = vpop.f32.mrf.mxu0
    %1924 = vdwg.mxu0
    %1925 = vmatprep.subr.mxu0 0.0
    %1926 = vmatpush1.msra.mxu0 0.0
    %1927 = vmatprep.subr.mxu0 0.0
    %1928 = vmatpush1.msra.mxu0 0.0
    %1929 = vmatprep.subr.mxu0 0.0
    %1930 = vmatpush1.msra.mxu0 0.0
    %1931 = vmatprep.subr.mxu0 0.0
    %1932 = vmatpush1.msra.mxu0 0.0
    %1933 = vmatprep.subr.mxu0 0.0
    %1934 = vmatpush1.msra.mxu0 0.0
    %1935 = vmatprep.subr.mxu0 0.0
    %1936 = vmatpush1.msra.mxu0 0.0
    %1937 = vmatprep.subr.mxu0 0.0
    %1938 = vmatpush1.msra.mxu0 0.0
    %1939 = vmatprep.subr.mxu0 0.0
    %1940 = vmatpush1.msra.mxu0 0.0
    %1941 = vmatprep.subr.mxu0 0.0
    %1942 = vmatpush1.msra.mxu0 0.0
    %1943 = vmatprep.subr.mxu0 0.0
    %1944 = vmatpush1.msra.mxu0 0.0
    %1945 = vmatprep.subr.mxu0 0.0
    %1946 = vmatpush1.msra.mxu0 0.0
    %1947 = vmatprep.subr.mxu0 0.0
    %1948 = vmatpush1.msra.mxu0 0.0
    %1949 = vmatprep.subr.mxu0 0.0
    %1950 = vmatpush1.msra.mxu0 0.0
    %1951 = vmatprep.subr.mxu0 0.0
    %1952 = vmatpush1.msra.mxu0 0.0
    %1953 = vmatprep.subr.mxu0 0.0
    %1954 = vmatpush1.msra.mxu0 %v142
    %1955 = vmatprep.subr.mxu0 0.0
    %1956 = vmatpush1.msra.mxu0 %v137
    %1957 = vmatprep.subr.mxu0 0.0
    %1958 = vmatpush2.msra.mxu0 0.0
    %1959 = vmatprep.subr.mxu0 0.0
    %1960 = vmatpush2.msra.mxu0 0.0
    %1961 = vmatprep.subr.mxu0 0.0
    %1962 = vmatpush2.msra.mxu0 0.0
    %1963 = vmatprep.subr.mxu0 0.0
    %1964 = vmatpush2.msra.mxu0 0.0
    %1965 = vmatprep.subr.mxu0 0.0
    %1966 = vmatpush2.msra.mxu0 0.0
    %1967 = vmatprep.subr.mxu0 0.0
    %1968 = vmatpush2.msra.mxu0 0.0
    %1969 = vmatprep.subr.mxu0 0.0
    %1970 = vmatpush2.msra.mxu0 0.0
    %1971 = vmatprep.subr.mxu0 0.0
    %1972 = vmatpush2.msra.mxu0 0.0
    %1973 = vmatprep.subr.mxu0 0.0
    %1974 = vmatpush2.msra.mxu0 0.0
    %1975 = vmatprep.subr.mxu0 0.0
    %1976 = vmatpush2.msra.mxu0 0.0
    %1977 = vmatprep.subr.mxu0 0.0
    %1978 = vmatpush2.msra.mxu0 0.0
    %1979 = vmatprep.subr.mxu0 0.0
    %1980 = vmatpush2.msra.mxu0 0.0
    %1981 = vmatprep.subr.mxu0 0.0
    %1982 = vmatpush2.msra.mxu0 0.0
    %1983 = vmatprep.subr.mxu0 0.0
    %1984 = vmatpush2.msra.mxu0 0.0
    %1985 = vmatprep.subr.mxu0 0.0
    %1986 = vmatpush2.msra.mxu0 0.0
    %1987 = vmatprep.subr.mxu0 0.0
    %1988 = vmatpush2.msra.mxu0 0.0
    %1989 = vmatprep.mubr.f32.mxu0 0.0
    %1990 = vmatmul.mubr.f32.gmra.mxu0 %v1853
    %v1991 = vpop.f32.mrf.mxu0
    %v1992 = vadd.f32 0.0, %v1991
    %v1993 = vpop.f32.mrf.mxu0
    %1994 = vdwg.mxu0
    %1995 = vmatprep.subr.mxu0 0.0
    %1996 = vmatpush1.msra.mxu0 0.0
    %1997 = vmatprep.subr.mxu0 0.0
    %1998 = vmatpush1.msra.mxu0 0.0
    %1999 = vmatprep.subr.mxu0 0.0
    %2000 = vmatpush1.msra.mxu0 0.0
    %2001 = vmatprep.subr.mxu0 0.0
    %2002 = vmatpush1.msra.mxu0 0.0
    %2003 = vmatprep.subr.mxu0 0.0
    %2004 = vmatpush1.msra.mxu0 0.0
    %2005 = vmatprep.subr.mxu0 0.0
    %2006 = vmatpush1.msra.mxu0 0.0
    %2007 = vmatprep.subr.mxu0 0.0
    %2008 = vmatpush1.msra.mxu0 0.0
    %2009 = vmatprep.subr.mxu0 0.0
    %2010 = vmatpush1.msra.mxu0 0.0
    %2011 = vmatprep.subr.mxu0 0.0
    %2012 = vmatpush1.msra.mxu0 0.0
    %2013 = vmatprep.subr.mxu0 0.0
    %2014 = vmatpush1.msra.mxu0 0.0
    %2015 = vmatprep.subr.mxu0 0.0
    %2016 = vmatpush1.msra.mxu0 0.0
    %2017 = vmatprep.subr.mxu0 0.0
    %2018 = vmatpush1.msra.mxu0 0.0
    %2019 = vmatprep.subr.mxu0 0.0
    %2020 = vmatpush1.msra.mxu0 0.0
    %2021 = vmatprep.subr.mxu0 0.0
    %2022 = vmatpush1.msra.mxu0 0.0
    %2023 = vmatprep.subr.mxu0 0.0
    %2024 = vmatpush1.msra.mxu0 %v223
    %2025 = vmatprep.subr.mxu0 0.0
    %2026 = vmatpush1.msra.mxu0 %v218
    %2027 = vmatprep.subr.mxu0 0.0
    %2028 = vmatpush2.msra.mxu0 0.0
    %2029 = vmatprep.subr.mxu0 0.0
    %2030 = vmatpush2.msra.mxu0 0.0
    %2031 = vmatprep.subr.mxu0 0.0
    %2032 = vmatpush2.msra.mxu0 0.0
    %2033 = vmatprep.subr.mxu0 0.0
    %2034 = vmatpush2.msra.mxu0 0.0
    %2035 = vmatprep.subr.mxu0 0.0
    %2036 = vmatpush2.msra.mxu0 0.0
    %2037 = vmatprep.subr.mxu0 0.0
    %2038 = vmatpush2.msra.mxu0 0.0
    %2039 = vmatprep.subr.mxu0 0.0
    %2040 = vmatpush2.msra.mxu0 0.0
    %2041 = vmatprep.subr.mxu0 0.0
    %2042 = vmatpush2.msra.mxu0 0.0
    %2043 = vmatprep.subr.mxu0 0.0
    %2044 = vmatpush2.msra.mxu0 0.0
    %2045 = vmatprep.subr.mxu0 0.0
    %2046 = vmatpush2.msra.mxu0 0.0
    %2047 = vmatprep.subr.mxu0 0.0
    %2048 = vmatpush2.msra.mxu0 0.0
    %2049 = vmatprep.subr.mxu0 0.0
    %2050 = vmatpush2.msra.mxu0 0.0
    %2051 = vmatprep.subr.mxu0 0.0
    %2052 = vmatpush2.msra.mxu0 0.0
    %2053 = vmatprep.subr.mxu0 0.0
    %2054 = vmatpush2.msra.mxu0 0.0
    %2055 = vmatprep.subr.mxu0 0.0
    %2056 = vmatpush2.msra.mxu0 0.0
    %2057 = vmatprep.subr.mxu0 0.0
    %2058 = vmatpush2.msra.mxu0 0.0
    %2059 = vmatprep.mubr.f32.mxu0 0.0
    %2060 = vmatmul.mubr.f32.gmra.mxu0 %v1853
    %v2061 = vpop.f32.mrf.mxu0
    %v2062 = vadd.f32 0.0, %v2061
    %v2063 = vpop.f32.mrf.mxu0
    %2064 = vdwg.mxu0
    %2065 = vmatprep.subr.mxu0 0.0
    %2066 = vmatpush1.msra.mxu0 0.0
    %2067 = vmatprep.subr.mxu0 0.0
    %2068 = vmatpush1.msra.mxu0 0.0
    %2069 = vmatprep.subr.mxu0 0.0
    %2070 = vmatpush1.msra.mxu0 0.0
    %2071 = vmatprep.subr.mxu0 0.0
    %2072 = vmatpush1.msra.mxu0 0.0
    %2073 = vmatprep.subr.mxu0 0.0
    %2074 = vmatpush1.msra.mxu0 0.0
    %2075 = vmatprep.subr.mxu0 0.0
    %2076 = vmatpush1.msra.mxu0 0.0
    %2077 = vmatprep.subr.mxu0 0.0
    %2078 = vmatpush1.msra.mxu0 0.0
    %2079 = vmatprep.subr.mxu0 0.0
    %2080 = vmatpush1.msra.mxu0 0.0
    %2081 = vmatprep.subr.mxu0 0.0
    %2082 = vmatpush1.msra.mxu0 0.0
    %2083 = vmatprep.subr.mxu0 0.0
    %2084 = vmatpush1.msra.mxu0 0.0
    %2085 = vmatprep.subr.mxu0 0.0
    %2086 = vmatpush1.msra.mxu0 0.0
    %2087 = vmatprep.subr.mxu0 0.0
    %2088 = vmatpush1.msra.mxu0 0.0
    %2089 = vmatprep.subr.mxu0 0.0
    %2090 = vmatpush1.msra.mxu0 0.0
    %2091 = vmatprep.subr.mxu0 0.0
    %2092 = vmatpush1.msra.mxu0 0.0
    %2093 = vmatprep.subr.mxu0 0.0
    %2094 = vmatpush1.msra.mxu0 %v298
    %2095 = vmatprep.subr.mxu0 0.0
    %2096 = vmatpush1.msra.mxu0 %v293
    %2097 = vmatprep.subr.mxu0 0.0
    %2098 = vmatpush2.msra.mxu0 0.0
    %2099 = vmatprep.subr.mxu0 0.0
    %2100 = vmatpush2.msra.mxu0 0.0
    %2101 = vmatprep.subr.mxu0 0.0
    %2102 = vmatpush2.msra.mxu0 0.0
    %2103 = vmatprep.subr.mxu0 0.0
    %2104 = vmatpush2.msra.mxu0 0.0
    %2105 = vmatprep.subr.mxu0 0.0
    %2106 = vmatpush2.msra.mxu0 0.0
    %2107 = vmatprep.subr.mxu0 0.0
    %2108 = vmatpush2.msra.mxu0 0.0
    %2109 = vmatprep.subr.mxu0 0.0
    %2110 = vmatpush2.msra.mxu0 0.0
    %2111 = vmatprep.subr.mxu0 0.0
    %2112 = vmatpush2.msra.mxu0 0.0
    %2113 = vmatprep.subr.mxu0 0.0
    %2114 = vmatpush2.msra.mxu0 0.0
    %2115 = vmatprep.subr.mxu0 0.0
    %2116 = vmatpush2.msra.mxu0 0.0
    %2117 = vmatprep.subr.mxu0 0.0
    %2118 = vmatpush2.msra.mxu0 0.0
    %2119 = vmatprep.subr.mxu0 0.0
    %2120 = vmatpush2.msra.mxu0 0.0
    %2121 = vmatprep.subr.mxu0 0.0
    %2122 = vmatpush2.msra.mxu0 0.0
    %2123 = vmatprep.subr.mxu0 0.0
    %2124 = vmatpush2.msra.mxu0 0.0
    %2125 = vmatprep.subr.mxu0 0.0
    %2126 = vmatpush2.msra.mxu0 0.0
    %2127 = vmatprep.subr.mxu0 0.0
    %2128 = vmatpush2.msra.mxu0 0.0
    %2129 = vmatprep.mubr.f32.mxu0 0.0
    %2130 = vmatmul.mubr.f32.gmra.mxu0 %v1853
    %v2131 = vpop.f32.mrf.mxu0
    %v2132 = vadd.f32 0.0, %v2131
    %v2133 = vpop.f32.mrf.mxu0
    %2134 = vdwg.mxu0
    %s2135 = sld [smem:[#allocation6]]
    %v2136 = vstv %s2135
    %v2137 = vmul.f32 %v2136, %v1851
    %s2138 = sld [smem:[#allocation6 + $0x1]]
    %v2139 = vstv %s2138
    %v2140 = vmul.f32 %v2139, %v1922
    %v2141 = vadd.f32 %v2137, %v2140
    %s2142 = sld [smem:[#allocation6 + $0x2]]
    %v2143 = vstv %s2142
    %v2144 = vmul.f32 %v2143, %v1992
    %v2145 = vadd.f32 %v2141, %v2144
    %s2146 = sld [smem:[#allocation6 + $0x3]]
    %v2147 = vstv %s2146
    %v2148 = vmul.f32 %v2147, %v2062
    %v2149 = vadd.f32 %v2145, %v2148
    %s2150 = sld [smem:[#allocation6 + $0x4]]
    %v2151 = vstv %s2150
    %v2152 = vmul.f32 %v2151, %v2132
    %v2153 = vadd.f32 %v2149, %v2152
    %s2154 = sld [smem:[#allocation6 + $0x80]]
    %v2155 = vstv %s2154
    %v2156 = vmul.f32 %v2155, %v1851
    %s2157 = sld [smem:[#allocation6 + $0x81]]
    %v2158 = vstv %s2157
    %v2159 = vmul.f32 %v2158, %v1922
    %v2160 = vadd.f32 %v2156, %v2159
    %s2161 = sld [smem:[#allocation6 + $0x82]]
    %v2162 = vstv %s2161
    %v2163 = vmul.f32 %v2162, %v1992
    %v2164 = vadd.f32 %v2160, %v2163
    %s2165 = sld [smem:[#allocation6 + $0x83]]
    %v2166 = vstv %s2165
    %v2167 = vmul.f32 %v2166, %v2062
    %v2168 = vadd.f32 %v2164, %v2167
    %s2169 = sld [smem:[#allocation6 + $0x84]]
    %v2170 = vstv %s2169
    %v2171 = vmul.f32 %v2170, %v2132
    %v2172 = vadd.f32 %v2168, %v2171
    %s2173 = sld [smem:[#allocation6 + $0x100]]
    %v2174 = vstv %s2173
    %v2175 = vmul.f32 %v2174, %v1851
    %s2176 = sld [smem:[#allocation6 + $0x101]]
    %v2177 = vstv %s2176
    %v2178 = vmul.f32 %v2177, %v1922
    %v2179 = vadd.f32 %v2175, %v2178
    %s2180 = sld [smem:[#allocation6 + $0x102]]
    %v2181 = vstv %s2180
    %v2182 = vmul.f32 %v2181, %v1992
    %v2183 = vadd.f32 %v2179, %v2182
    %s2184 = sld [smem:[#allocation6 + $0x103]]
    %v2185 = vstv %s2184
    %v2186 = vmul.f32 %v2185, %v2062
    %v2187 = vadd.f32 %v2183, %v2186
    %s2188 = sld [smem:[#allocation6 + $0x104]]
    %v2189 = vstv %s2188
    %v2190 = vmul.f32 %v2189, %v2132
    %v2191 = vadd.f32 %v2187, %v2190
    %s2192 = sld [smem:[#allocation6 + $0x180]]
    %v2193 = vstv %s2192
    %v2194 = vmul.f32 %v2193, %v1851
    %s2195 = sld [smem:[#allocation6 + $0x181]]
    %v2196 = vstv %s2195
    %v2197 = vmul.f32 %v2196, %v1922
    %v2198 = vadd.f32 %v2194, %v2197
    %s2199 = sld [smem:[#allocation6 + $0x182]]
    %v2200 = vstv %s2199
    %v2201 = vmul.f32 %v2200, %v1992
    %v2202 = vadd.f32 %v2198, %v2201
    %s2203 = sld [smem:[#allocation6 + $0x183]]
    %v2204 = vstv %s2203
    %v2205 = vmul.f32 %v2204, %v2062
    %v2206 = vadd.f32 %v2202, %v2205
    %s2207 = sld [smem:[#allocation6 + $0x184]]
    %v2208 = vstv %s2207
    %v2209 = vmul.f32 %v2208, %v2132
    %v2210 = vadd.f32 %v2206, %v2209
    %v2212 = vlaneseq
    %v2213 = vshrl.u32 %v2212, 7
    %v2214 = vsub.s32 0, %v2213
    %v2215 = vrot.slane %v2172, %v2214
    %v2218 = vlaneseq
    %v2219 = vshrl.u32 %v2218, 7
    %v2220 = vsub.s32 0, %v2219
    %v2221 = vrot.slane %v2191, %v2220
    %v2224 = vlaneseq
    %v2225 = vshrl.u32 %v2224, 7
    %v2226 = vsub.s32 0, %v2225
    %v2227 = vrot.slane %v2210, %v2226
    %vm2229 = vcmask 1040384
    %v2230 = vsel %vm2229, %v2153, %v2215
    %vm2231 = vcmask 1041408
    %v2232 = vsel %vm2231, %v2230, %v2221
    %vm2233 = vcmask 1042432
    %v2234 = vsel %vm2233, %v2232, %v2227
    %vm2235 = vcmask 125952
    %v2236 = vsel %vm2235, %v2234, -inf
    %v2237 = vrot.slane %v2236, 4
    %v2238 = vmax.f32 %v2236, %v2237
    %v2239 = vrot.slane %v2238, 2
    %v2240 = vmax.f32 %v2238, %v2239
    %v2241 = vrot.slane %v2240, 1
    %v2242 = vmax.f32 %v2240, %v2241
    %v2243 = vsub.f32 %v2234, %v2242
    %v2244 = vmul.f32 %v2243, 1.442695
    %v2245 = vpow.pop %v2244
    %v2246 = vsel %vm2235, %v2245, 0.0
    %v2247 = vrot.slane %v2246, 4
    %v2248 = vadd.f32 %v2246, %v2247
    %v2249 = vrot.slane %v2248, 2
    %v2250 = vadd.f32 %v2248, %v2249
    %v2251 = vrot.slane %v2250, 1
    %v2252 = vadd.f32 %v2250, %v2251
    %v2253 = vrcp.pop %v2252
    %v2254 = vmul.f32 %v2245, %v2253
    %2255 = vst.msk [vmem:[#allocation9] sm:$0xf] %vm2235, %v2254
    // Predicated region
    $region30: #{tpu_custom_call.1} parent=1 // pred_check
      _
    $region31: #{tpu_custom_call.1} parent=1 // pred_check_branch
      %2257 = sbr.rel (0) target = $region33
    $region32: #{tpu_custom_call.1} parent=1 // pred_region
      %s2259 = ssub.s32 64, 64
      %2260 = vsyncadd [#allocation4], %s2259
      %s2262 = sshll.u32 [#allocation9], 4
      %s2263 = int_to_ptr.vmem [resolvable:$true] %s2262
      %2265 = dma.vmem_to_hbm [thread:$0]  %s2263, 64, %s4, [#allocation4]
    $region33: #{tpu_custom_call.1} parent=1 // pred_fallthru
      _
    // Predicated region
    $region34: #{tpu_custom_call.1} parent=1 // pred_check
      _
    $region35: #{tpu_custom_call.1} parent=1 // pred_check_branch
      %2267 = sbr.rel (0) target = $region37
    $region36: #{tpu_custom_call.1} parent=1 // pred_region
      %2268 = dma.done [#allocation4], 64
    $region37: #{tpu_custom_call.1} parent=1 // pred_fallthru
      _
    %2269 = vsyncpa [#allocation3], 1
    %2270 = vsyncpa [#allocation4], 1
    %2271 = vsyncpa [#allocation5], 1
    %2272 = vsyncpa [#allocation7], 1

</llo_original>
